<compile_context>
chip_gen: v5e
topology: v5e:2x2
jax: 0.10.0
libtpu: 0.0.40
codegen_flags: <defaults>
</compile_context>

<pallas_src>
import functools
import math

import jax
import jax.numpy as jnp
import numpy as np
from jax.experimental import pallas as pl
from jax.experimental.pallas import tpu as pltpu


def _video_softmax_kernel(
    x_row_ref,      # (1, NT)  f32  logits, lane-dense (used in phase 1)
    ids_row_ref,    # (1, NT)  i32  ids, lane-dense
    x_col_ref,      # (NT, 1)  f32  logits, sublane layout (used in phase 0)
    ids_col_ref,    # (NT, 1)  i32  ids, sublane layout (used in phase 0)
    table_ref,      # (2, V)   f32  row 0 = storage (log consts), row 1 = present
    out_ref,        # (1, NT)  f32
    table_out_ref,  # (2, V)   f32  aliased onto the table input buffer
    m_ref,          # (1, V)   f32  scratch: running per-id max (u-frame)
    s_ref,          # (1, V)   f32  scratch: running per-id sum exp(u - m)
    cnt_ref,        # (1, V)   f32  scratch: running per-id occurrence count
    const_col_ref,  # (V, 1)   f32  scratch: post-update constants (column)
    *,
    decay: float,
):
    phase = pl.program_id(0)
    t = pl.program_id(1)
    num_tiles = pl.num_programs(1)

    NT = x_row_ref.shape[1]
    V = table_ref.shape[1]

    log_d = jnp.float32(math.log(decay))
    log_1md = jnp.float32(math.log(1.0 - decay))
    NEG = jnp.float32(-1e30)   # finite -inf stand-in; avoids (-inf)-(-inf) NaNs

    # ---------------- phase 0, first tile: seed per-id online-LSE state -----
    @pl.when(jnp.logical_and(phase == 0, t == 0))
    def _init():
        storage = table_ref[0:1, :]
        present = table_ref[1:2, :] > 0.5
        # Pre-existing constant enters the LSE with weight d^K -> value S0 in
        # the u-frame (the K*log d shift is applied once at finalize).
        m_ref[...] = jnp.where(present, storage, NEG)
        s_ref[...] = jnp.where(present, 1.0, 0.0)
        cnt_ref[...] = jnp.zeros_like(cnt_ref)

    # ---------------- phase 0: accumulate this tile into the per-id state ---
    @pl.when(phase == 0)
    def _accumulate():
        x_col = x_col_ref[...]          # (NT, 1)
        ids_col = ids_col_ref[...]      # (NT, 1)
        ids_row = ids_row_ref[...]      # (1, NT)

        # Membership: element i (sublane) belongs to video id v (lane).
        v_iota = jax.lax.broadcasted_iota(jnp.int32, (NT, V), 1)
        mask_nv = ids_col == v_iota                                  # (NT, V) bool

        # In-tile exclusive rank from the (NT, NT) id-equality matrix (VPU,
        # no MXU matmul): r_local[i] = #{ j < i in tile : ids_j == ids_i }.
        eq = ids_col == ids_row                                      # (NT, NT)
        i_iota = jax.lax.broadcasted_iota(jnp.int32, (NT, NT), 0)
        j_iota = jax.lax.broadcasted_iota(jnp.int32, (NT, NT), 1)
        before = jnp.logical_and(eq, j_iota < i_iota)
        r_local = jnp.sum(jnp.where(before, 1.0, 0.0), axis=1, keepdims=True)

        # Gather running per-id count / present flag to element space.
        cnt_row = cnt_ref[...]                                       # (1, V)
        p_row = table_ref[1:2, :]                                    # (1, V)
        cnt_before = jnp.sum(jnp.where(mask_nv, cnt_row, 0.0),
                             axis=1, keepdims=True)                  # (NT, 1)
        p_elem = jnp.sum(jnp.where(mask_nv, p_row, 0.0),
                         axis=1, keepdims=True)                      # (NT, 1)

        rank = cnt_before + r_local
        first_unseen = jnp.logical_and(rank < 0.5, p_elem < 0.5)
        w = jnp.where(first_unseen, 0.0, log_1md)
        # u_i = x_i - (1 + rank_i) * log d + w_i ; K_v*log d added at finalize.
        u = x_col + (-1.0 - rank) * log_d + w                        # (NT, 1)

        # Online segmented (max, sum) update; ids stay lane-dense (1, V).
        m_old = m_ref[...]
        m_tile = jnp.max(jnp.where(mask_nv, u, NEG), axis=0, keepdims=True)
        m_new = jnp.maximum(m_old, m_tile)
        e = jnp.exp(jnp.where(mask_nv, u - m_new, NEG))              # (NT, V)
        s_ref[...] = (s_ref[...] * jnp.exp(m_old - m_new)
                      + jnp.sum(e, axis=0, keepdims=True))
        m_ref[...] = m_new
        cnt_ref[...] = cnt_row + jnp.sum(jnp.where(mask_nv, 1.0, 0.0),
                                         axis=0, keepdims=True)

        out_ref[...] = jnp.zeros_like(out_ref)   # phase 1 writes the real values

        # -------- last tile of phase 0: finalize the table (resident block) -
        @pl.when(t == num_tiles - 1)
        def _finalize():
            storage = table_ref[0:1, :]
            present = table_ref[1:2, :]
            cnt = cnt_ref[...]
            seen = cnt > 0.5
            new_s = jnp.where(seen,
                              cnt * log_d + m_ref[...] + jnp.log(s_ref[...]),
                              storage)
            new_p = jnp.maximum(present, jnp.where(seen, 1.0, 0.0))
            table_out_ref[0:1, :] = new_s
            table_out_ref[1:2, :] = new_p
            # (1, V) -> (V, 1) relayout via diagonal select (done once per
            # call; robust lowering, needed for the lane-dense phase-1 gather).
            vi = jax.lax.broadcasted_iota(jnp.int32, (V, V), 0)
            vj = jax.lax.broadcasted_iota(jnp.int32, (V, V), 1)
            const_col_ref[...] = jnp.sum(jnp.where(vi == vj, new_s, 0.0),
                                         axis=1, keepdims=True)

    # ---------------- phase 1: gather post-update constants, emit output ----
    @pl.when(phase == 1)
    def _emit():
        x_row = x_row_ref[...]                                       # (1, NT)
        ids_row = ids_row_ref[...]                                   # (1, NT)
        v_iota = jax.lax.broadcasted_iota(jnp.int32, (V, NT), 0)
        mask_vn = v_iota == ids_row                                  # (V, NT)
        const = jnp.sum(jnp.where(mask_vn, const_col_ref[...], 0.0),
                        axis=0, keepdims=True)                       # (1, NT)
        out_ref[...] = jnp.exp(x_row - const)


@functools.partial(jax.jit, static_argnames=("decay", "n_tile"))
def video_softmax(x, ids, table, *, decay, n_tile=128):
    """One VideoSoftmax batch step.

    Args:
      x:     (N,) logits.
      ids:   (N,) int video ids in [0, V)  (out-of-range ids are ignored).
      table: (2, V) f32 state; row 0 = running log constants, row 1 = present.
      decay: exponential decay in (0, 1).
      n_tile: batch tile (multiple of 128).  Size per-generation so the
              O(n_tile*V + n_tile^2) f32 working set fits scoped VMEM
              (16 MiB v5e / 32 MiB v6e / 32-of-64 MiB v7x); raise
              vmem_limit_bytes in CompilerParams if using large tiles.

    Returns:
      (out, new_table) with out.shape == (N,) and new_table.shape == (2, V).
    """
    assert 0.0 < decay < 1.0, "decay must be strictly inside (0, 1)"
    assert n_tile % 128 == 0 and n_tile >= 128
    N = x.shape[0]
    V = table.shape[1]

    num_tiles = int(pl.cdiv(N, n_tile))
    Np = num_tiles * n_tile
    pad = Np - N

    x_f32 = x.astype(jnp.float32)
    x_pad = jnp.pad(x_f32, (0, pad))
    # Padding ids use the out-of-range sentinel V -> all-false mask -> no
    # effect on the table; padded outputs are sliced off below.
    ids_pad = jnp.pad(ids.astype(jnp.int32), (0, pad), constant_values=V)

    x_row = x_pad.reshape(1, Np)
    ids_row = ids_pad.reshape(1, Np)
    x_col = x_pad.reshape(Np, 1)
    ids_col = ids_pad.reshape(Np, 1)
    tbl = table.astype(jnp.float32)

    out, new_table = pl.pallas_call(
        functools.partial(_video_softmax_kernel, decay=float(decay)),
        out_shape=(
            jax.ShapeDtypeStruct((1, Np), jnp.float32),
            jax.ShapeDtypeStruct((2, V), jnp.float32),
        ),
        grid_spec=pltpu.PrefetchScalarGridSpec(
            num_scalar_prefetch=0,
            grid=(2, num_tiles),                      # (phase, batch tile)
            in_specs=[
                pl.BlockSpec((1, n_tile), lambda p, t: (0, t)),   # x row
                pl.BlockSpec((1, n_tile), lambda p, t: (0, t)),   # ids row
                pl.BlockSpec((n_tile, 1), lambda p, t: (t, 0)),   # x col
                pl.BlockSpec((n_tile, 1), lambda p, t: (t, 0)),   # ids col
                pl.BlockSpec((2, V), lambda p, t: (0, 0)),        # table (resident)
            ],
            out_specs=(
                pl.BlockSpec((1, n_tile), lambda p, t: (0, t)),   # out
                pl.BlockSpec((2, V), lambda p, t: (0, 0)),        # new table (resident)
            ),
            scratch_shapes=[
                pltpu.VMEM((1, V), jnp.float32),   # m  (running per-id max)
                pltpu.VMEM((1, V), jnp.float32),   # s  (running per-id sum)
                pltpu.VMEM((1, V), jnp.float32),   # cnt
                pltpu.VMEM((V, 1), jnp.float32),   # const column for phase 1
            ],
        ),
        input_output_aliases={4: 1},   # update the packed table in place
        compiler_params=pltpu.CompilerParams(
            # Both axes carry state (phase order, per-id partials) -> arbitrary.
            dimension_semantics=("arbitrary", "arbitrary")),
    )(x_row, ids_row, x_col, ids_col, tbl)

    return out.reshape(Np)[:N], new_table


# --- pure-Python reference mirroring the PyTorch module (dict-based) --------
def _lsetwo(a, b):
    return math.log(1.0 + math.exp(-abs(a - b))) + max(a, b)


def _reference(x, ids, storage_dict, decay):
    for xv, vid in zip(np.asarray(x), np.asarray(ids)):
        vid = int(vid)
        xv = float(xv)
        if vid not in storage_dict:
            storage_dict[vid] = xv
        else:
            a = math.log(decay) + storage_dict[vid]
            b = math.log(1.0 - decay) + xv
            storage_dict[vid] = _lsetwo(a, b)
    consts = np.array([storage_dict[int(v)] for v in ids], dtype=np.float32)
    return np.exp(np.asarray(x, dtype=np.float32) - consts)


if __name__ == "__main__":
    N = 200          # clips in the batch (2 tiles of 128 -> exercises carry)
    V = 128          # id-table size (lane-dense); ids drawn from [0, 24)
    decay = 0.9

    key = jax.random.PRNGKey(0)
    k1, k2, k3, k4 = jax.random.split(key, 4)
    xa = jax.random.normal(k1, (N,), dtype=jnp.float32)
    ids_a = jax.random.randint(k2, (N,), 0, 24, dtype=jnp.int32)   # duplicates
    xb = jax.random.normal(k3, (N,), dtype=jnp.float32)
    ids_b = jax.random.randint(k4, (N,), 0, 24, dtype=jnp.int32)

    table = jnp.zeros((2, V), dtype=jnp.float32)   # row 0 storage, row 1 present

    # Two chained batches: exercises first-seen, in-batch duplicates across
    # tiles, and the decay-of-existing-constant path.
    out_a, table = video_softmax(xa, ids_a, table, decay=decay)
    out_b, table = video_softmax(xb, ids_b, table, decay=decay)
    jax.block_until_ready((out_a, out_b, table))

    ref_dict = {}
    ref_a = _reference(xa, ids_a, ref_dict, decay)
    ref_b = _reference(xb, ids_b, ref_dict, decay)
    np.testing.assert_allclose(np.asarray(out_a), ref_a, rtol=1e-4, atol=1e-4)
    np.testing.assert_allclose(np.asarray(out_b), ref_b, rtol=1e-4, atol=1e-4)

    print("KERNEL_OK")
</pallas_src>

<mosaic_0001>
module attributes {stable_mosaic.version = 11 : i64} {
  func.func @_video_softmax_kernel(%arg0: i32, %arg1: i32, %arg2: memref<1x128xf32, #tpu.memory_space<vmem>>, %arg3: memref<1x128xi32, #tpu.memory_space<vmem>>, %arg4: memref<128x1xf32, #tpu.memory_space<vmem>>, %arg5: memref<128x1xi32, #tpu.memory_space<vmem>>, %arg6: memref<2x128xf32, #tpu.memory_space<vmem>>, %arg7: memref<1x128xf32, #tpu.memory_space<vmem>>, %arg8: memref<2x128xf32, #tpu.memory_space<vmem>>, %arg9: memref<1x128xf32, #tpu.memory_space<vmem>>, %arg10: memref<1x128xf32, #tpu.memory_space<vmem>>, %arg11: memref<1x128xf32, #tpu.memory_space<vmem>>, %arg12: memref<128x1xf32, #tpu.memory_space<vmem>>) attributes {dimension_semantics = [#tpu.dimension_semantics<arbitrary>, #tpu.dimension_semantics<arbitrary>], iteration_bounds = array<i64: 2, 2>, scalar_prefetch = 0 : i64, scratch_operands = 4 : i64, tpu.core_type = #tpu.core_type<tc>, window_params = [{transform_indices = @transform_0, window_bounds = array<i64: 1, 128>}, {transform_indices = @transform_1, window_bounds = array<i64: 1, 128>}, {transform_indices = @transform_2, window_bounds = array<i64: 128, 1>}, {transform_indices = @transform_3, window_bounds = array<i64: 128, 1>}, {pipeline_mode = #tpu.pipeline_mode<synchronous>, transform_indices = @transform_4, window_bounds = array<i64: 2, 128>}, {transform_indices = @transform_5, window_bounds = array<i64: 1, 128>}, {pipeline_mode = #tpu.pipeline_mode<synchronous>, transform_indices = @transform_6, window_bounds = array<i64: 2, 128>}]} {
    %c0_i32 = arith.constant 0 : i32
    %0 = arith.cmpi eq, %arg0, %c0_i32 : i32
    %c0_i32_0 = arith.constant 0 : i32
    %1 = arith.cmpi eq, %arg1, %c0_i32_0 : i32
    %2 = arith.andi %0, %1 : i1
    %3 = arith.extui %2 : i1 to i32
    %cst = arith.constant -1.000000e+30 : f32
    %c0_i32_1 = arith.constant 0 : i32
    %4 = arith.cmpi ne, %3, %c0_i32_1 : i32
    scf.if %4 {
      %c0 = arith.constant 0 : index
      %c0_8 = arith.constant 0 : index
      %11 = vector.load %arg6[%c0, %c0_8] : memref<2x128xf32, #tpu.memory_space<vmem>>, vector<1x128xf32>
      %c1 = arith.constant 1 : index
      %c0_9 = arith.constant 0 : index
      %12 = vector.load %arg6[%c1, %c0_9] : memref<2x128xf32, #tpu.memory_space<vmem>>, vector<1x128xf32>
      %cst_10 = arith.constant 5.000000e-01 : f32
      %13 = vector.broadcast %cst_10 : f32 to vector<1x128xf32>
      %14 = arith.cmpf ogt, %12, %13 : vector<1x128xf32>
      %15 = vector.broadcast %cst : f32 to vector<1x128xf32>
      %16 = arith.select %14, %11, %15 : vector<1x128xi1>, vector<1x128xf32>
      %c0_11 = arith.constant 0 : index
      %c0_12 = arith.constant 0 : index
      %17 = vector.load %arg9[%c0_11, %c0_12] : memref<1x128xf32, #tpu.memory_space<vmem>>, vector<1x128xf32>
      tpu.vector_store %arg9[%c0_11, %c0_12], %16 {strides = array<i32>} : memref<1x128xf32, #tpu.memory_space<vmem>>, vector<1x128xf32>,
      %cst_13 = arith.constant 1.000000e+00 : f32
      %cst_14 = arith.constant 0.000000e+00 : f32
      %18 = vector.broadcast %cst_13 : f32 to vector<1x128xf32>
      %19 = vector.broadcast %cst_14 : f32 to vector<1x128xf32>
      %20 = arith.select %14, %18, %19 : vector<1x128xi1>, vector<1x128xf32>
      %c0_15 = arith.constant 0 : index
      %c0_16 = arith.constant 0 : index
      %21 = vector.load %arg10[%c0_15, %c0_16] : memref<1x128xf32, #tpu.memory_space<vmem>>, vector<1x128xf32>
      tpu.vector_store %arg10[%c0_15, %c0_16], %20 {strides = array<i32>} : memref<1x128xf32, #tpu.memory_space<vmem>>, vector<1x128xf32>,
      %cst_17 = arith.constant 0.000000e+00 : f32
      %22 = vector.broadcast %cst_17 : f32 to vector<1x128xf32>
      %c0_18 = arith.constant 0 : index
      %c0_19 = arith.constant 0 : index
      %23 = vector.load %arg11[%c0_18, %c0_19] : memref<1x128xf32, #tpu.memory_space<vmem>>, vector<1x128xf32>
      tpu.vector_store %arg11[%c0_18, %c0_19], %22 {strides = array<i32>} : memref<1x128xf32, #tpu.memory_space<vmem>>, vector<1x128xf32>,
    } else {
    }
    %c0_i32_2 = arith.constant 0 : i32
    %5 = arith.cmpi eq, %arg0, %c0_i32_2 : i32
    %6 = arith.extui %5 : i1 to i32
    %cst_3 = arith.constant -2.30258512 : f32
    %cst_4 = arith.constant -0.105360515 : f32
    %cst_5 = arith.constant -1.000000e+30 : f32
    %c0_i32_6 = arith.constant 0 : i32
    %7 = arith.cmpi ne, %6, %c0_i32_6 : i32
    scf.if %7 {
      %c0 = arith.constant 0 : index
      %c0_8 = arith.constant 0 : index
      %11 = vector.load %arg4[%c0, %c0_8] : memref<128x1xf32, #tpu.memory_space<vmem>>, vector<128x1xf32>
      %c0_9 = arith.constant 0 : index
      %c0_10 = arith.constant 0 : index
      %12 = vector.load %arg5[%c0_9, %c0_10] : memref<128x1xi32, #tpu.memory_space<vmem>>, vector<128x1xi32>
      %c0_11 = arith.constant 0 : index
      %c0_12 = arith.constant 0 : index
      %13 = vector.load %arg3[%c0_11, %c0_12] : memref<1x128xi32, #tpu.memory_space<vmem>>, vector<1x128xi32>
      %14 = tpu.iota {dimensions = array<i32: 1>} : vector<128x128xi32>
      %15 = vector.broadcast %12 : vector<128x1xi32> to vector<128x128xi32>
      %16 = arith.cmpi eq, %15, %14 : vector<128x128xi32>
      %17 = vector.broadcast %12 : vector<128x1xi32> to vector<128x128xi32>
      %18 = vector.broadcast %13 : vector<1x128xi32> to vector<128x128xi32>
      %19 = arith.cmpi eq, %17, %18 : vector<128x128xi32>
      %20 = tpu.iota {dimensions = array<i32: 0>} : vector<128x128xi32>
      %21 = tpu.iota {dimensions = array<i32: 1>} : vector<128x128xi32>
      %22 = arith.cmpi slt, %21, %20 : vector<128x128xi32>
      %23 = arith.andi %19, %22 : vector<128x128xi1>
      %cst_13 = arith.constant 1.000000e+00 : f32
      %cst_14 = arith.constant 0.000000e+00 : f32
      %24 = vector.broadcast %cst_13 : f32 to vector<128x128xf32>
      %25 = vector.broadcast %cst_14 : f32 to vector<128x128xf32>
      %26 = arith.select %23, %24, %25 : vector<128x128xi1>, vector<128x128xf32>
      %cst_15 = arith.constant dense<0.000000e+00> : vector<128xf32>
      %27 = vector.multi_reduction <add>, %26, %cst_15 [1] : vector<128x128xf32> to vector<128xf32>
      %28 = vector.shape_cast %27 : vector<128xf32> to vector<128x1xf32>
      %c0_16 = arith.constant 0 : index
      %c0_17 = arith.constant 0 : index
      %29 = vector.load %arg11[%c0_16, %c0_17] : memref<1x128xf32, #tpu.memory_space<vmem>>, vector<1x128xf32>
      %c1 = arith.constant 1 : index
      %c0_18 = arith.constant 0 : index
      %30 = vector.load %arg6[%c1, %c0_18] : memref<2x128xf32, #tpu.memory_space<vmem>>, vector<1x128xf32>
      %cst_19 = arith.constant 0.000000e+00 : f32
      %31 = vector.shape_cast %29 : vector<1x128xf32> to vector<1x128xf32>
      %32 = vector.broadcast %31 : vector<1x128xf32> to vector<128x128xf32>
      %33 = vector.broadcast %cst_19 : f32 to vector<128x128xf32>
      %34 = arith.select %16, %32, %33 : vector<128x128xi1>, vector<128x128xf32>
      %cst_20 = arith.constant dense<0.000000e+00> : vector<128xf32>
      %35 = vector.multi_reduction <add>, %34, %cst_20 [1] : vector<128x128xf32> to vector<128xf32>
      %36 = vector.shape_cast %35 : vector<128xf32> to vector<128x1xf32>
      %cst_21 = arith.constant 0.000000e+00 : f32
      %37 = vector.shape_cast %30 : vector<1x128xf32> to vector<1x128xf32>
      %38 = vector.broadcast %37 : vector<1x128xf32> to vector<128x128xf32>
      %39 = vector.broadcast %cst_21 : f32 to vector<128x128xf32>
      %40 = arith.select %16, %38, %39 : vector<128x128xi1>, vector<128x128xf32>
      %cst_22 = arith.constant dense<0.000000e+00> : vector<128xf32>
      %41 = vector.multi_reduction <add>, %40, %cst_22 [1] : vector<128x128xf32> to vector<128xf32>
      %42 = vector.shape_cast %41 : vector<128xf32> to vector<128x1xf32>
      %43 = arith.addf %36, %28 : vector<128x1xf32>
      %cst_23 = arith.constant 5.000000e-01 : f32
      %44 = vector.broadcast %cst_23 : f32 to vector<128x1xf32>
      %45 = arith.cmpf olt, %43, %44 : vector<128x1xf32>
      %cst_24 = arith.constant 5.000000e-01 : f32
      %46 = vector.broadcast %cst_24 : f32 to vector<128x1xf32>
      %47 = arith.cmpf olt, %42, %46 : vector<128x1xf32>
      %48 = arith.andi %45, %47 : vector<128x1xi1>
      %cst_25 = arith.constant 0.000000e+00 : f32
      %49 = vector.broadcast %cst_25 : f32 to vector<128x1xf32>
      %50 = vector.broadcast %cst_3 : f32 to vector<128x1xf32>
      %51 = arith.select %48, %49, %50 : vector<128x1xi1>, vector<128x1xf32>
      %cst_26 = arith.constant -1.000000e+00 : f32
      %52 = vector.broadcast %cst_26 : f32 to vector<128x1xf32>
      %53 = arith.subf %52, %43 : vector<128x1xf32>
      %54 = vector.broadcast %cst_4 : f32 to vector<128x1xf32>
      %55 = arith.mulf %53, %54 : vector<128x1xf32>
      %56 = arith.addf %11, %55 : vector<128x1xf32>
      %57 = arith.addf %56, %51 : vector<128x1xf32>
      %c0_27 = arith.constant 0 : index
      %c0_28 = arith.constant 0 : index
      %58 = vector.load %arg9[%c0_27, %c0_28] : memref<1x128xf32, #tpu.memory_space<vmem>>, vector<1x128xf32>
      %59 = vector.shape_cast %57 : vector<128x1xf32> to vector<128x1xf32>
      %60 = vector.broadcast %59 : vector<128x1xf32> to vector<128x128xf32>
      %61 = vector.broadcast %cst_5 : f32 to vector<128x128xf32>
      %62 = arith.select %16, %60, %61 : vector<128x128xi1>, vector<128x128xf32>
      %cst_29 = arith.constant dense<0xFF800000> : vector<128xf32>
      %63 = vector.multi_reduction <maximumf>, %62, %cst_29 [0] : vector<128x128xf32> to vector<128xf32>
      %64 = vector.shape_cast %63 : vector<128xf32> to vector<1x128xf32>
      %65 = arith.maximumf %58, %64 : vector<1x128xf32>
      %66 = vector.broadcast %57 : vector<128x1xf32> to vector<128x128xf32>
      %67 = vector.broadcast %65 : vector<1x128xf32> to vector<128x128xf32>
      %68 = arith.subf %66, %67 : vector<128x128xf32>
      %69 = vector.broadcast %cst_5 : f32 to vector<128x128xf32>
      %70 = arith.select %16, %68, %69 : vector<128x128xi1>, vector<128x128xf32>
      %71 = math.exp %70 : vector<128x128xf32>
      %c0_30 = arith.constant 0 : index
      %c0_31 = arith.constant 0 : index
      %72 = vector.load %arg10[%c0_30, %c0_31] : memref<1x128xf32, #tpu.memory_space<vmem>>, vector<1x128xf32>
      %73 = arith.subf %58, %65 : vector<1x128xf32>
      %74 = math.exp %73 : vector<1x128xf32>
      %75 = arith.mulf %72, %74 : vector<1x128xf32>
      %cst_32 = arith.constant dense<0.000000e+00> : vector<128xf32>
      %76 = vector.multi_reduction <add>, %71, %cst_32 [0] : vector<128x128xf32> to vector<128xf32>
      %77 = vector.shape_cast %76 : vector<128xf32> to vector<1x128xf32>
      %78 = arith.addf %75, %77 : vector<1x128xf32>
      %c0_33 = arith.constant 0 : index
      %c0_34 = arith.constant 0 : index
      %79 = vector.load %arg10[%c0_33, %c0_34] : memref<1x128xf32, #tpu.memory_space<vmem>>, vector<1x128xf32>
      tpu.vector_store %arg10[%c0_33, %c0_34], %78 {strides = array<i32>} : memref<1x128xf32, #tpu.memory_space<vmem>>, vector<1x128xf32>,
      %c0_35 = arith.constant 0 : index
      %c0_36 = arith.constant 0 : index
      %80 = vector.load %arg9[%c0_35, %c0_36] : memref<1x128xf32, #tpu.memory_space<vmem>>, vector<1x128xf32>
      tpu.vector_store %arg9[%c0_35, %c0_36], %65 {strides = array<i32>} : memref<1x128xf32, #tpu.memory_space<vmem>>, vector<1x128xf32>,
      %cst_37 = arith.constant 1.000000e+00 : f32
      %cst_38 = arith.constant 0.000000e+00 : f32
      %81 = vector.broadcast %cst_37 : f32 to vector<128x128xf32>
      %82 = vector.broadcast %cst_38 : f32 to vector<128x128xf32>
      %83 = arith.select %16, %81, %82 : vector<128x128xi1>, vector<128x128xf32>
      %cst_39 = arith.constant dense<0.000000e+00> : vector<128xf32>
      %84 = vector.multi_reduction <add>, %83, %cst_39 [0] : vector<128x128xf32> to vector<128xf32>
      %85 = vector.shape_cast %84 : vector<128xf32> to vector<1x128xf32>
      %86 = arith.addf %29, %85 : vector<1x128xf32>
      %c0_40 = arith.constant 0 : index
      %c0_41 = arith.constant 0 : index
      %87 = vector.load %arg11[%c0_40, %c0_41] : memref<1x128xf32, #tpu.memory_space<vmem>>, vector<1x128xf32>
      tpu.vector_store %arg11[%c0_40, %c0_41], %86 {strides = array<i32>} : memref<1x128xf32, #tpu.memory_space<vmem>>, vector<1x128xf32>,
      %cst_42 = arith.constant 0.000000e+00 : f32
      %88 = vector.broadcast %cst_42 : f32 to vector<1x128xf32>
      %c0_43 = arith.constant 0 : index
      %c0_44 = arith.constant 0 : index
      %89 = vector.load %arg7[%c0_43, %c0_44] : memref<1x128xf32, #tpu.memory_space<vmem>>, vector<1x128xf32>
      tpu.vector_store %arg7[%c0_43, %c0_44], %88 {strides = array<i32>} : memref<1x128xf32, #tpu.memory_space<vmem>>, vector<1x128xf32>,
      %c1_i32_45 = arith.constant 1 : i32
      %90 = arith.cmpi eq, %arg1, %c1_i32_45 : i32
      %91 = arith.extui %90 : i1 to i32
      %c0_i32_46 = arith.constant 0 : i32
      %92 = arith.cmpi ne, %91, %c0_i32_46 : i32
      scf.if %92 {
        %c0_47 = arith.constant 0 : index
        %c0_48 = arith.constant 0 : index
        %93 = vector.load %arg6[%c0_47, %c0_48] : memref<2x128xf32, #tpu.memory_space<vmem>>, vector<1x128xf32>
        %c1_49 = arith.constant 1 : index
        %c0_50 = arith.constant 0 : index
        %94 = vector.load %arg6[%c1_49, %c0_50] : memref<2x128xf32, #tpu.memory_space<vmem>>, vector<1x128xf32>
        %c0_51 = arith.constant 0 : index
        %c0_52 = arith.constant 0 : index
        %95 = vector.load %arg11[%c0_51, %c0_52] : memref<1x128xf32, #tpu.memory_space<vmem>>, vector<1x128xf32>
        %cst_53 = arith.constant 5.000000e-01 : f32
        %96 = vector.broadcast %cst_53 : f32 to vector<1x128xf32>
        %97 = arith.cmpf ogt, %95, %96 : vector<1x128xf32>
        %98 = vector.broadcast %cst_4 : f32 to vector<1x128xf32>
        %99 = arith.mulf %95, %98 : vector<1x128xf32>
        %c0_54 = arith.constant 0 : index
        %c0_55 = arith.constant 0 : index
        %100 = vector.load %arg9[%c0_54, %c0_55] : memref<1x128xf32, #tpu.memory_space<vmem>>, vector<1x128xf32>
        %101 = arith.addf %99, %100 : vector<1x128xf32>
        %c0_56 = arith.constant 0 : index
        %c0_57 = arith.constant 0 : index
        %102 = vector.load %arg10[%c0_56, %c0_57] : memref<1x128xf32, #tpu.memory_space<vmem>>, vector<1x128xf32>
        %103 = math.log %102 : vector<1x128xf32>
        %104 = arith.addf %101, %103 : vector<1x128xf32>
        %105 = arith.select %97, %104, %93 : vector<1x128xi1>, vector<1x128xf32>
        %cst_58 = arith.constant 1.000000e+00 : f32
        %cst_59 = arith.constant 0.000000e+00 : f32
        %106 = vector.broadcast %cst_58 : f32 to vector<1x128xf32>
        %107 = vector.broadcast %cst_59 : f32 to vector<1x128xf32>
        %108 = arith.select %97, %106, %107 : vector<1x128xi1>, vector<1x128xf32>
        %109 = arith.maximumf %94, %108 : vector<1x128xf32>
        %c0_60 = arith.constant 0 : index
        %c0_61 = arith.constant 0 : index
        %110 = vector.load %arg8[%c0_60, %c0_61] : memref<2x128xf32, #tpu.memory_space<vmem>>, vector<1x128xf32>
        tpu.vector_store %arg8[%c0_60, %c0_61], %105 {strides = array<i32>} : memref<2x128xf32, #tpu.memory_space<vmem>>, vector<1x128xf32>,
        %c1_62 = arith.constant 1 : index
        %c0_63 = arith.constant 0 : index
        %111 = vector.load %arg8[%c1_62, %c0_63] : memref<2x128xf32, #tpu.memory_space<vmem>>, vector<1x128xf32>
        tpu.vector_store %arg8[%c1_62, %c0_63], %109 {strides = array<i32>} : memref<2x128xf32, #tpu.memory_space<vmem>>, vector<1x128xf32>,
        %112 = tpu.iota {dimensions = array<i32: 0>} : vector<128x128xi32>
        %113 = tpu.iota {dimensions = array<i32: 1>} : vector<128x128xi32>
        %114 = arith.cmpi eq, %112, %113 : vector<128x128xi32>
        %cst_64 = arith.constant 0.000000e+00 : f32
        %115 = vector.shape_cast %105 : vector<1x128xf32> to vector<1x128xf32>
        %116 = vector.broadcast %115 : vector<1x128xf32> to vector<128x128xf32>
        %117 = vector.broadcast %cst_64 : f32 to vector<128x128xf32>
        %118 = arith.select %114, %116, %117 : vector<128x128xi1>, vector<128x128xf32>
        %cst_65 = arith.constant dense<0.000000e+00> : vector<128xf32>
        %119 = vector.multi_reduction <add>, %118, %cst_65 [1] : vector<128x128xf32> to vector<128xf32>
        %120 = vector.shape_cast %119 : vector<128xf32> to vector<128x1xf32>
        %c0_66 = arith.constant 0 : index
        %c0_67 = arith.constant 0 : index
        %121 = vector.load %arg12[%c0_66, %c0_67] : memref<128x1xf32, #tpu.memory_space<vmem>>, vector<128x1xf32>
        tpu.vector_store %arg12[%c0_66, %c0_67], %120 {strides = array<i32>} : memref<128x1xf32, #tpu.memory_space<vmem>>, vector<128x1xf32>,
      } else {
      }
    } else {
    }
    %c1_i32 = arith.constant 1 : i32
    %8 = arith.cmpi eq, %arg0, %c1_i32 : i32
    %9 = arith.extui %8 : i1 to i32
    %c0_i32_7 = arith.constant 0 : i32
    %10 = arith.cmpi ne, %9, %c0_i32_7 : i32
    scf.if %10 {
      %c0 = arith.constant 0 : index
      %c0_8 = arith.constant 0 : index
      %11 = vector.load %arg2[%c0, %c0_8] : memref<1x128xf32, #tpu.memory_space<vmem>>, vector<1x128xf32>
      %c0_9 = arith.constant 0 : index
      %c0_10 = arith.constant 0 : index
      %12 = vector.load %arg3[%c0_9, %c0_10] : memref<1x128xi32, #tpu.memory_space<vmem>>, vector<1x128xi32>
      %13 = tpu.iota {dimensions = array<i32: 0>} : vector<128x128xi32>
      %14 = vector.broadcast %12 : vector<1x128xi32> to vector<128x128xi32>
      %15 = arith.cmpi eq, %13, %14 : vector<128x128xi32>
      %c0_11 = arith.constant 0 : index
      %c0_12 = arith.constant 0 : index
      %16 = vector.load %arg12[%c0_11, %c0_12] : memref<128x1xf32, #tpu.memory_space<vmem>>, vector<128x1xf32>
      %cst_13 = arith.constant 0.000000e+00 : f32
      %17 = vector.shape_cast %16 : vector<128x1xf32> to vector<128x1xf32>
      %18 = vector.broadcast %17 : vector<128x1xf32> to vector<128x128xf32>
      %19 = vector.broadcast %cst_13 : f32 to vector<128x128xf32>
      %20 = arith.select %15, %18, %19 : vector<128x128xi1>, vector<128x128xf32>
      %cst_14 = arith.constant dense<0.000000e+00> : vector<128xf32>
      %21 = vector.multi_reduction <add>, %20, %cst_14 [0] : vector<128x128xf32> to vector<128xf32>
      %22 = vector.shape_cast %21 : vector<128xf32> to vector<1x128xf32>
      %23 = arith.subf %11, %22 : vector<1x128xf32>
      %24 = math.exp %23 : vector<1x128xf32>
      %c0_15 = arith.constant 0 : index
      %c0_16 = arith.constant 0 : index
      %25 = vector.load %arg7[%c0_15, %c0_16] : memref<1x128xf32, #tpu.memory_space<vmem>>, vector<1x128xf32>
      tpu.vector_store %arg7[%c0_15, %c0_16], %24 {strides = array<i32>} : memref<1x128xf32, #tpu.memory_space<vmem>>, vector<1x128xf32>,
    } else {
    }
    return
  }
  func.func @transform_0(%arg0: i32, %arg1: i32) -> (i32, i32) {
    %c0_i32 = arith.constant 0 : i32
    %c0_i32_0 = arith.constant 0 : i32
    return %c0_i32, %arg1 : i32, i32
  }
  func.func @transform_1(%arg0: i32, %arg1: i32) -> (i32, i32) {
    %c0_i32 = arith.constant 0 : i32
    %c0_i32_0 = arith.constant 0 : i32
    return %c0_i32, %arg1 : i32, i32
  }
  func.func @transform_2(%arg0: i32, %arg1: i32) -> (i32, i32) {
    %c0_i32 = arith.constant 0 : i32
    %c0_i32_0 = arith.constant 0 : i32
    return %arg1, %c0_i32 : i32, i32
  }
  func.func @transform_3(%arg0: i32, %arg1: i32) -> (i32, i32) {
    %c0_i32 = arith.constant 0 : i32
    %c0_i32_0 = arith.constant 0 : i32
    return %arg1, %c0_i32 : i32, i32
  }
  func.func @transform_4(%arg0: i32, %arg1: i32) -> (i32, i32) {
    %c0_i32 = arith.constant 0 : i32
    %c0_i32_0 = arith.constant 0 : i32
    %c0_i32_1 = arith.constant 0 : i32
    return %c0_i32, %c0_i32_0 : i32, i32
  }
  func.func @transform_5(%arg0: i32, %arg1: i32) -> (i32, i32) {
    %c0_i32 = arith.constant 0 : i32
    %c0_i32_0 = arith.constant 0 : i32
    return %c0_i32, %arg1 : i32, i32
  }
  func.func @transform_6(%arg0: i32, %arg1: i32) -> (i32, i32) {
    %c0_i32 = arith.constant 0 : i32
    %c0_i32_0 = arith.constant 0 : i32
    %c0_i32_1 = arith.constant 0 : i32
    return %c0_i32, %c0_i32_0 : i32, i32
  }
}

</mosaic_0001>

<llo_original>
// kernel: video_softmax.1
$region0: #{video_softmax.1}
  #allocation0 [shape = 'u32[]', space=smem, size = 0x4, offset = 0x4, fixed_abs, tag = 'smem constant byte address 0x4 - core index']
  #allocation1 [shape = 'u32[72,128]{1,0:T(1,128)}', space=vmem, size = 0x9000, scoped, tag = 'internal scratch']
  #allocation2 [shape = 'f32[1,128]{1,0:T(1,128)}', space=vmem, size = 0x200, scoped, tag = 'scratch operand']
  #allocation3 [shape = 'f32[1,128]{1,0:T(1,128)}', space=vmem, size = 0x200, scoped, tag = 'scratch operand']
  #allocation4 [shape = 'f32[1,128]{1,0:T(1,128)}', space=vmem, size = 0x200, scoped, tag = 'scratch operand']
  #allocation5 [shape = 'f32[128,1]{1,0:T(8,128)}', space=vmem, size = 0x10000, scoped, tag = 'scratch operand']
  %s0 = inlined_call_operand.vmem [shape: f32[1,256], index: 0, kind: input, shape index: {}]
  %s1 = inlined_call_operand.vmem [shape: s32[1,256], index: 1, kind: input, shape index: {}]
  %s2 = inlined_call_operand.vmem [shape: f32[256,1], index: 2, kind: input, shape index: {}]
  %s3 = inlined_call_operand.vmem [shape: s32[256,1], index: 3, kind: input, shape index: {}]
  %s4 = inlined_call_operand.vmem [shape: f32[2,128], index: 4, kind: input, shape index: {}, may-alias: {4,6}]
  %s5 = inlined_call_operand.hbm [shape: f32[1,256], index: 5, kind: output, shape index: {0}]
  %s6 = inlined_call_operand.vmem [shape: f32[2,128], index: 6, kind: output, shape index: {1}, may-alias: {4,6}]
  %7 = xla_tuple %s5, %s6
  %s8 = sld [smem:[#allocation0]]
  $region77: #{video_softmax.1} parent=0
    _
  %s10 = ssub.s32 1, %s8
  %s11 = scalar_select 0, %s10, %s8
  $region1: #{video_softmax.1} parent=0
    #allocation6 [shape = 'u8[1024]{0}', space=vmem, size = 0x400, scoped, tag = 'output window, operand 0']
    #allocation7 [shape = 's32[2]{0}', space=sflag, size = 0x8, scoped, tag = 'scoped memory for video_softmax.1']
    %12 = vsyncpa [#allocation7], 0
    %s13 = scalar_lea.sflag [#allocation7], 1
    %14 = vsyncpa %s13, 0
    loop: start=0, step=1, limit=6
    $region2: #{video_softmax.1} parent=1 // loop_pre_header
      _
    $region3: #{video_softmax.1} parent=1 // loop_header
      %s16 = sphi 0, %s20
      %p17 = scmp.ge.s32.totalorder %s16, 6
      %s23 = sphi 0, %s35
      %s24 = sphi 0, %s31
      %s25 = sphi 0, %s23
      %s26 = sphi 0, %s24
      %s27 = sphi 0, %s25
      %s28 = sphi 0, %s26
      %s38 = sphi 0, %s40
      %s41 = sphi 0, %s38
      %s42 = sphi 0, %s41
      %s58 = sphi 0, %s42
      %s64 = sphi 0, %s66
      %s67 = sphi 0, %s64
      %s68 = sphi 0, %s67
      %s84 = sphi 0, %s68
      %s90 = sphi 0, %s92
      %s93 = sphi 0, %s90
      %s94 = sphi 0, %s93
      %s110 = sphi 0, %s94
      %s116 = sphi 0, %s118
      %s119 = sphi 0, %s116
      %s120 = sphi 0, %s119
      %s136 = sphi 0, %s120
      %s140 = sphi 0, %s140
      %s142 = sphi 0, %s140
      %s143 = sphi 0, %s142
      %s157 = sphi 0, %s143
      %s163 = sphi 0, %s165
      %s166 = sphi 0, %s163
      %s167 = sphi 0, %s166
      %s183 = sphi 0, %s167
      %s187 = sphi 0, %s187
      %s189 = sphi 0, %s187
      %s190 = sphi 0, %s189
      %s204 = sphi 0, %s190
    $region4: #{video_softmax.1} parent=1 // loop_header_branch
      %19 = sbr.rel (%p17) target = $region8
    $region5: #{video_softmax.1} parent=1 // loop_body
      %s21 = ssub.s32 %s16, 1
      %s22 = ssub.s32 %s16, 2
      %s29 = sadd.s32 1, %s24
      %p30 = scmp.ge.s32.totalorder %s29, 2
      %s31 = scalar_select %p30, 0, %s29
      %s32 = sadd.s32 1, %s23
      %s33 = scalar_select %p30, %s32, %s23
      %p34 = scmp.ge.s32.totalorder %s33, 2
      %s35 = scalar_select %p34, 0, %s33
      %s36 = ssub.s32 %s24, %s31
      %p37 = scmp.eq.s32.totalorder %s36, 0
      %s39 = sadd.s32 %s38, 1
      %s40 = scalar_select %p37, %s38, %s39
      %p43 = pneg %p37
      %p44 = scmp.eq.s32.totalorder %s16, 3
      %p45 = por %p43, %p44
      %p46 = scmp.ne.s32.totalorder %s38, %s41
      %p47 = scmp.eq.s32.totalorder %s16, 0
      %p48 = por %p46, %p47
      %p49 = scmp.ne.s32.totalorder %s38, %s41
      %p50 = scmp.eq.s32.totalorder %s21, 3
      %p51 = por %p49, %p50
      %p52 = scmp.ne.s32.totalorder %s41, %s42
      %p53 = scmp.eq.s32.totalorder %s21, 0
      %p54 = por %p52, %p53
      %p55 = scmp.ne.s32.totalorder %s41, %s42
      %p56 = scmp.eq.s32.totalorder %s22, 3
      %p57 = por %p55, %p56
      %p59 = scmp.ne.s32.totalorder %s42, %s58
      %p60 = scmp.eq.s32.totalorder %s22, 0
      %p61 = por %p59, %p60
      %s62 = ssub.s32 %s24, %s31
      %p63 = scmp.eq.s32.totalorder %s62, 0
      %s65 = sadd.s32 %s64, 1
      %s66 = scalar_select %p63, %s64, %s65
      %p69 = pneg %p63
      %p70 = scmp.eq.s32.totalorder %s16, 3
      %p71 = por %p69, %p70
      %p72 = scmp.ne.s32.totalorder %s64, %s67
      %p73 = scmp.eq.s32.totalorder %s16, 0
      %p74 = por %p72, %p73
      %p75 = scmp.ne.s32.totalorder %s64, %s67
      %p76 = scmp.eq.s32.totalorder %s21, 3
      %p77 = por %p75, %p76
      %p78 = scmp.ne.s32.totalorder %s67, %s68
      %p79 = scmp.eq.s32.totalorder %s21, 0
      %p80 = por %p78, %p79
      %p81 = scmp.ne.s32.totalorder %s67, %s68
      %p82 = scmp.eq.s32.totalorder %s22, 3
      %p83 = por %p81, %p82
      %p85 = scmp.ne.s32.totalorder %s68, %s84
      %p86 = scmp.eq.s32.totalorder %s22, 0
      %p87 = por %p85, %p86
      %s88 = ssub.s32 %s24, %s31
      %p89 = scmp.eq.s32.totalorder %s88, 0
      %s91 = sadd.s32 %s90, 1
      %s92 = scalar_select %p89, %s90, %s91
      %p95 = pneg %p89
      %p96 = scmp.eq.s32.totalorder %s16, 3
      %p97 = por %p95, %p96
      %p98 = scmp.ne.s32.totalorder %s90, %s93
      %p99 = scmp.eq.s32.totalorder %s16, 0
      %p100 = por %p98, %p99
      %p101 = scmp.ne.s32.totalorder %s90, %s93
      %p102 = scmp.eq.s32.totalorder %s21, 3
      %p103 = por %p101, %p102
      %p104 = scmp.ne.s32.totalorder %s93, %s94
      %p105 = scmp.eq.s32.totalorder %s21, 0
      %p106 = por %p104, %p105
      %p107 = scmp.ne.s32.totalorder %s93, %s94
      %p108 = scmp.eq.s32.totalorder %s22, 3
      %p109 = por %p107, %p108
      %p111 = scmp.ne.s32.totalorder %s94, %s110
      %p112 = scmp.eq.s32.totalorder %s22, 0
      %p113 = por %p111, %p112
      %s114 = ssub.s32 %s24, %s31
      %p115 = scmp.eq.s32.totalorder %s114, 0
      %s117 = sadd.s32 %s116, 1
      %s118 = scalar_select %p115, %s116, %s117
      %p121 = pneg %p115
      %p122 = scmp.eq.s32.totalorder %s16, 3
      %p123 = por %p121, %p122
      %p124 = scmp.ne.s32.totalorder %s116, %s119
      %p125 = scmp.eq.s32.totalorder %s16, 0
      %p126 = por %p124, %p125
      %p127 = scmp.ne.s32.totalorder %s116, %s119
      %p128 = scmp.eq.s32.totalorder %s21, 3
      %p129 = por %p127, %p128
      %p130 = scmp.ne.s32.totalorder %s119, %s120
      %p131 = scmp.eq.s32.totalorder %s21, 0
      %p132 = por %p130, %p131
      %p133 = scmp.ne.s32.totalorder %s119, %s120
      %p134 = scmp.eq.s32.totalorder %s22, 3
      %p135 = por %p133, %p134
      %p137 = scmp.ne.s32.totalorder %s120, %s136
      %p138 = scmp.eq.s32.totalorder %s22, 0
      %p139 = por %p137, %p138
      %s141 = sadd.s32 %s140, 1
      %p144 = scmp.eq.s32.totalorder %s16, 3
      %p145 = scmp.ne.s32.totalorder %s140, %s142
      %p146 = scmp.eq.s32.totalorder %s16, 0
      %p147 = por %p145, %p146
      %p148 = scmp.ne.s32.totalorder %s140, %s142
      %p149 = scmp.eq.s32.totalorder %s21, 3
      %p150 = por %p148, %p149
      %p151 = scmp.ne.s32.totalorder %s142, %s143
      %p152 = scmp.eq.s32.totalorder %s21, 0
      %p153 = por %p151, %p152
      %p154 = scmp.ne.s32.totalorder %s142, %s143
      %p155 = scmp.eq.s32.totalorder %s22, 3
      %p156 = por %p154, %p155
      %p158 = scmp.ne.s32.totalorder %s143, %s157
      %p159 = scmp.eq.s32.totalorder %s22, 0
      %p160 = por %p158, %p159
      %s161 = ssub.s32 %s24, %s31
      %p162 = scmp.eq.s32.totalorder %s161, 0
      %s164 = sadd.s32 %s163, 1
      %s165 = scalar_select %p162, %s163, %s164
      %p168 = pneg %p162
      %p169 = scmp.eq.s32.totalorder %s16, 3
      %p170 = por %p168, %p169
      %p171 = scmp.ne.s32.totalorder %s163, %s166
      %p172 = scmp.eq.s32.totalorder %s16, 0
      %p173 = por %p171, %p172
      %p174 = scmp.ne.s32.totalorder %s163, %s166
      %p175 = scmp.eq.s32.totalorder %s21, 3
      %p176 = por %p174, %p175
      %p177 = scmp.ne.s32.totalorder %s166, %s167
      %p178 = scmp.eq.s32.totalorder %s21, 0
      %p179 = por %p177, %p178
      %p180 = scmp.ne.s32.totalorder %s166, %s167
      %p181 = scmp.eq.s32.totalorder %s22, 3
      %p182 = por %p180, %p181
      %p184 = scmp.ne.s32.totalorder %s167, %s183
      %p185 = scmp.eq.s32.totalorder %s22, 0
      %p186 = por %p184, %p185
      %s188 = sadd.s32 %s187, 1
      %p191 = scmp.eq.s32.totalorder %s16, 3
      %p192 = scmp.ne.s32.totalorder %s187, %s189
      %p193 = scmp.eq.s32.totalorder %s16, 0
      %p194 = por %p192, %p193
      %p195 = scmp.ne.s32.totalorder %s187, %s189
      %p196 = scmp.eq.s32.totalorder %s21, 3
      %p197 = por %p195, %p196
      %p198 = scmp.ne.s32.totalorder %s189, %s190
      %p199 = scmp.eq.s32.totalorder %s21, 0
      %p200 = por %p198, %p199
      %p201 = scmp.ne.s32.totalorder %s189, %s190
      %p202 = scmp.eq.s32.totalorder %s22, 3
      %p203 = por %p201, %p202
      %p205 = scmp.ne.s32.totalorder %s190, %s204
      %p206 = scmp.eq.s32.totalorder %s22, 0
      %p207 = por %p205, %p206
      %p208 = scmp.le.s32.totalorder 1, %s16
      %p209 = scmp.lt.s32.totalorder %s16, 5
      %p210 = pnand %p208, %p209
      %p211 = pneg %p210
      // Predicated region
      $region9: #{video_softmax.1} parent=5 // pred_check
        _
      $region10: #{video_softmax.1} parent=5 // pred_check_branch
        %213 = sbr.rel (%p210) target = $region12
      $region11: #{video_softmax.1} parent=5 // pred_region
        %s214 = ssub.s32 %s16, 1
        // Predicated region
        $region13: #{video_softmax.1} parent=11 // pred_check
          %p215 = pneg %p153
        $region14: #{video_softmax.1} parent=11 // pred_check_branch
          %217 = sbr.rel (%p215) target = $region16
        $region15: #{video_softmax.1} parent=11 // pred_region
          _
        $region16: #{video_softmax.1} parent=11 // pred_fallthru
          _
      $region12: #{video_softmax.1} parent=5 // pred_fallthru
        _
      %p218 = scmp.lt.s32.totalorder %s16, 4
      // Predicated region
      $region17: #{video_softmax.1} parent=5 // pred_check
        %p219 = pneg %p218
      $region18: #{video_softmax.1} parent=5 // pred_check_branch
        %221 = sbr.rel (%p219) target = $region20
      $region19: #{video_softmax.1} parent=5 // pred_region
        // Predicated region
        $region21: #{video_softmax.1} parent=19 // pred_check
          %p222 = pneg %p48
        $region22: #{video_softmax.1} parent=19 // pred_check_branch
          %224 = sbr.rel (%p222) target = $region24
        $region23: #{video_softmax.1} parent=19 // pred_region
          %p225 = scmp.lt.s32.totalorder %s24, 1
          %s226 = scalar_select %p225, %s24, 1
          %s227 = scalar_lea.vmem %s0, %s226
        $region24: #{video_softmax.1} parent=19 // pred_fallthru
          _
        // Predicated region
        $region25: #{video_softmax.1} parent=19 // pred_check
          %p228 = pneg %p74
        $region26: #{video_softmax.1} parent=19 // pred_check_branch
          %230 = sbr.rel (%p228) target = $region28
        $region27: #{video_softmax.1} parent=19 // pred_region
          %p231 = scmp.lt.s32.totalorder %s24, 1
          %s232 = scalar_select %p231, %s24, 1
          %s233 = scalar_lea.vmem %s1, %s232
        $region28: #{video_softmax.1} parent=19 // pred_fallthru
          _
        // Predicated region
        $region29: #{video_softmax.1} parent=19 // pred_check
          %p234 = pneg %p100
        $region30: #{video_softmax.1} parent=19 // pred_check_branch
          %236 = sbr.rel (%p234) target = $region32
        $region31: #{video_softmax.1} parent=19 // pred_region
          %s237 = smul.u32 16, %s24
          %p238 = scmp.lt.s32.totalorder %s237, 31
          %s239 = scalar_select %p238, %s237, 31
          %s240 = smul.addr %s239, 8
          %s241 = scalar_lea.vmem %s2, %s240
          %s242 = smul.u32 16, %s24
        $region32: #{video_softmax.1} parent=19 // pred_fallthru
          _
        // Predicated region
        $region33: #{video_softmax.1} parent=19 // pred_check
          %p243 = pneg %p126
        $region34: #{video_softmax.1} parent=19 // pred_check_branch
          %245 = sbr.rel (%p243) target = $region36
        $region35: #{video_softmax.1} parent=19 // pred_region
          %s246 = smul.u32 16, %s24
          %p247 = scmp.lt.s32.totalorder %s246, 31
          %s248 = scalar_select %p247, %s246, 31
          %s249 = smul.addr %s248, 8
          %s250 = scalar_lea.vmem %s3, %s249
          %s251 = smul.u32 16, %s24
        $region36: #{video_softmax.1} parent=19 // pred_fallthru
          _
      $region20: #{video_softmax.1} parent=5 // pred_fallthru
        _
      %p252 = scmp.le.s32.totalorder 1, %s16
      %p253 = scmp.lt.s32.totalorder %s16, 5
      %p254 = pnand %p252, %p253
      %p255 = pneg %p254
      // Predicated region
      $region37: #{video_softmax.1} parent=5 // pred_check
        _
      $region38: #{video_softmax.1} parent=5 // pred_check_branch
        %257 = sbr.rel (%p254) target = $region40
      $region39: #{video_softmax.1} parent=5 // pred_region
        %s258 = ssub.s32 %s16, 1
        %p259 = scmp.lt.s32.totalorder %s26, 1
        %s260 = scalar_select %p259, %s26, 1
        %s261 = scalar_lea.vmem %s0, %s260
        %p262 = pneg %p54
        %p263 = pneg %p51
        %p264 = scmp.lt.s32.totalorder %s26, 1
        %s265 = scalar_select %p264, %s26, 1
        %s266 = scalar_lea.vmem %s1, %s265
        %p267 = pneg %p80
        %p268 = pneg %p77
        %s269 = smul.u32 16, %s26
        %p270 = scmp.lt.s32.totalorder %s269, 31
        %s271 = scalar_select %p270, %s269, 31
        %s272 = smul.addr %s271, 8
        %s273 = scalar_lea.vmem %s2, %s272
        %p274 = pneg %p106
        %p275 = pneg %p103
        %s276 = smul.u32 16, %s26
        %p277 = scmp.lt.s32.totalorder %s276, 31
        %s278 = scalar_select %p277, %s276, 31
        %s279 = smul.addr %s278, 8
        %s280 = scalar_lea.vmem %s3, %s279
        %p281 = pneg %p132
        %p282 = pneg %p129
        %p283 = pneg %p153
        %p284 = pneg %p150
        %p285 = pneg %p179
        %p286 = pneg %p176
        %s287 = sand.u32 %s166, 1
        %s288 = scalar_lea.sflag [#allocation7], %s287
        %s289 = sand.u32 %s166, 1
        %s290 = scalar_lea.vmem [#allocation6], %s289
        %p291 = pneg %p200
        %p292 = pneg %p197
        %p293 = scmp.lt.s32.totalorder %s26, 1
        %s294 = scalar_select %p293, %s26, 1
        %s295 = scalar_lea.vmem %s0, %s294
        %p296 = scmp.lt.s32.totalorder %s26, 1
        %s297 = scalar_select %p296, %s26, 1
        %s298 = scalar_lea.vmem %s1, %s297
        %s299 = smul.u32 16, %s26
        %p300 = scmp.lt.s32.totalorder %s299, 31
        %s301 = scalar_select %p300, %s299, 31
        %s302 = smul.addr %s301, 8
        %s303 = scalar_lea.vmem %s2, %s302
        %s304 = smul.u32 16, %s26
        %s305 = smul.u32 16, %s26
        %p306 = scmp.lt.s32.totalorder %s305, 31
        %s307 = scalar_select %p306, %s305, 31
        %s308 = smul.addr %s307, 8
        %s309 = scalar_lea.vmem %s3, %s308
        %s310 = smul.u32 16, %s26
        %p311 = scmp.eq.s32.totalorder %s25, 0
        %p312 = scmp.eq.s32.totalorder %s26, 0
        %p313 = pnand %p311, %p312
        %p314 = pneg %p313
        // Predicated region
        $region41: #{video_softmax.1} parent=39 // pred_check
          _
        $region42: #{video_softmax.1} parent=39 // pred_check_branch
          %316 = sbr.rel (%p313) target = $region44
        $region43: #{video_softmax.1} parent=39 // pred_region
          %v317 = vld [vmem:[%s4] sm:$0x1]
          %v318 = vld [vmem:[%s4 + $0x1] sm:$0x1]
          %vm319 = vcmp.gt.f32.partialorder %v318, 0.5
          %v320 = vsel %vm319, %v317, -1e+30
          %321 = vst [vmem:[#allocation2] sm:$0x1] %v320
          %v322 = vsel %vm319, 1.0, 0.0
          %323 = vst [vmem:[#allocation3] sm:$0x1] %v322
          %324 = vst [vmem:[#allocation4] sm:$0x1] 0.0
        $region44: #{video_softmax.1} parent=39 // pred_fallthru
          _
        // Predicated region
        $region45: #{video_softmax.1} parent=39 // pred_check
          %p325 = pneg %p311
        $region46: #{video_softmax.1} parent=39 // pred_check_branch
          %327 = sbr.rel (%p325) target = $region48
        $region47: #{video_softmax.1} parent=39 // pred_region
          %v328 = vld [vmem:[%s303] sm:$0xff]
          %v329 = vld [vmem:[%s303 + $0x8] sm:$0xff]
          %v330 = vld [vmem:[%s303 + $0x10] sm:$0xff]
          %v331 = vld [vmem:[%s303 + $0x18] sm:$0xff]
          %v332 = vld [vmem:[%s303 + $0x20] sm:$0xff]
          %v333 = vld [vmem:[%s303 + $0x28] sm:$0xff]
          %v334 = vld [vmem:[%s303 + $0x30] sm:$0xff]
          %v335 = vld [vmem:[%s303 + $0x38] sm:$0xff]
          %v336 = vld [vmem:[%s303 + $0x40] sm:$0xff]
          %v337 = vld [vmem:[%s303 + $0x48] sm:$0xff]
          %v338 = vld [vmem:[%s303 + $0x50] sm:$0xff]
          %v339 = vld [vmem:[%s303 + $0x58] sm:$0xff]
          %v340 = vld [vmem:[%s303 + $0x60] sm:$0xff]
          %v341 = vld [vmem:[%s303 + $0x68] sm:$0xff]
          %v342 = vld [vmem:[%s303 + $0x70] sm:$0xff]
          %v343 = vld [vmem:[%s303 + $0x78] sm:$0xff]
          %v344 = vld [vmem:[%s309] sm:$0xff]
          %v345 = vld [vmem:[%s309 + $0x8] sm:$0xff]
          %v346 = vld [vmem:[%s309 + $0x10] sm:$0xff]
          %v347 = vld [vmem:[%s309 + $0x18] sm:$0xff]
          %v348 = vld [vmem:[%s309 + $0x20] sm:$0xff]
          %v349 = vld [vmem:[%s309 + $0x28] sm:$0xff]
          %v350 = vld [vmem:[%s309 + $0x30] sm:$0xff]
          %v351 = vld [vmem:[%s309 + $0x38] sm:$0xff]
          %v352 = vld [vmem:[%s309 + $0x40] sm:$0xff]
          %v353 = vld [vmem:[%s309 + $0x48] sm:$0xff]
          %v354 = vld [vmem:[%s309 + $0x50] sm:$0xff]
          %v355 = vld [vmem:[%s309 + $0x58] sm:$0xff]
          %v356 = vld [vmem:[%s309 + $0x60] sm:$0xff]
          %v357 = vld [vmem:[%s309 + $0x68] sm:$0xff]
          %v358 = vld [vmem:[%s309 + $0x70] sm:$0xff]
          %v359 = vld [vmem:[%s309 + $0x78] sm:$0xff]
          %v360 = vld [vmem:[%s298] sm:$0x1]
          %v361 = vlaneseq
          %v362 = vand.u32 %v361, 127
          %363 = vset.pattern.permute.xlu0 0
          %364 = vperm.xlu0 %363, %v344
          %v365 = vpop.permute.xlu0 %364
          %366 = vset.pattern.permute.xlu0 0
          %367 = vperm.xlu0 %366, %v345
          %v368 = vpop.permute.xlu0 %367
          %369 = vset.pattern.permute.xlu0 0
          %370 = vperm.xlu0 %369, %v346
          %v371 = vpop.permute.xlu0 %370
          %372 = vset.pattern.permute.xlu0 0
          %373 = vperm.xlu0 %372, %v347
          %v374 = vpop.permute.xlu0 %373
          %375 = vset.pattern.permute.xlu0 0
          %376 = vperm.xlu0 %375, %v348
          %v377 = vpop.permute.xlu0 %376
          %378 = vset.pattern.permute.xlu0 0
          %379 = vperm.xlu0 %378, %v349
          %v380 = vpop.permute.xlu0 %379
          %381 = vset.pattern.permute.xlu0 0
          %382 = vperm.xlu0 %381, %v350
          %v383 = vpop.permute.xlu0 %382
          %384 = vset.pattern.permute.xlu0 0
          %385 = vperm.xlu0 %384, %v351
          %v386 = vpop.permute.xlu0 %385
          %387 = vset.pattern.permute.xlu0 0
          %388 = vperm.xlu0 %387, %v352
          %v389 = vpop.permute.xlu0 %388
          %390 = vset.pattern.permute.xlu0 0
          %391 = vperm.xlu0 %390, %v353
          %v392 = vpop.permute.xlu0 %391
          %393 = vset.pattern.permute.xlu0 0
          %394 = vperm.xlu0 %393, %v354
          %v395 = vpop.permute.xlu0 %394
          %396 = vset.pattern.permute.xlu0 0
          %397 = vperm.xlu0 %396, %v355
          %v398 = vpop.permute.xlu0 %397
          %399 = vset.pattern.permute.xlu0 0
          %400 = vperm.xlu0 %399, %v356
          %v401 = vpop.permute.xlu0 %400
          %402 = vset.pattern.permute.xlu0 0
          %403 = vperm.xlu0 %402, %v357
          %v404 = vpop.permute.xlu0 %403
          %405 = vset.pattern.permute.xlu0 0
          %406 = vperm.xlu0 %405, %v358
          %v407 = vpop.permute.xlu0 %406
          %408 = vset.pattern.permute.xlu0 0
          %409 = vperm.xlu0 %408, %v359
          %v410 = vpop.permute.xlu0 %409
          %vm411 = vcmp.eq.s32.totalorder %v365, %v362
          %vm412 = vcmp.eq.s32.totalorder %v368, %v362
          %vm413 = vcmp.eq.s32.totalorder %v371, %v362
          %vm414 = vcmp.eq.s32.totalorder %v374, %v362
          %vm415 = vcmp.eq.s32.totalorder %v377, %v362
          %vm416 = vcmp.eq.s32.totalorder %v380, %v362
          %vm417 = vcmp.eq.s32.totalorder %v383, %v362
          %vm418 = vcmp.eq.s32.totalorder %v386, %v362
          %vm419 = vcmp.eq.s32.totalorder %v389, %v362
          %vm420 = vcmp.eq.s32.totalorder %v392, %v362
          %vm421 = vcmp.eq.s32.totalorder %v395, %v362
          %vm422 = vcmp.eq.s32.totalorder %v398, %v362
          %vm423 = vcmp.eq.s32.totalorder %v401, %v362
          %vm424 = vcmp.eq.s32.totalorder %v404, %v362
          %vm425 = vcmp.eq.s32.totalorder %v407, %v362
          %vm426 = vcmp.eq.s32.totalorder %v410, %v362
          %v427 = vperm.slane %v360, 0
          %vm428 = vcmp.eq.s32.totalorder %v365, %v427
          %vm429 = vcmp.eq.s32.totalorder %v368, %v427
          %vm430 = vcmp.eq.s32.totalorder %v371, %v427
          %vm431 = vcmp.eq.s32.totalorder %v374, %v427
          %vm432 = vcmp.eq.s32.totalorder %v377, %v427
          %vm433 = vcmp.eq.s32.totalorder %v380, %v427
          %vm434 = vcmp.eq.s32.totalorder %v383, %v427
          %vm435 = vcmp.eq.s32.totalorder %v386, %v427
          %vm436 = vcmp.eq.s32.totalorder %v389, %v427
          %vm437 = vcmp.eq.s32.totalorder %v392, %v427
          %vm438 = vcmp.eq.s32.totalorder %v395, %v427
          %vm439 = vcmp.eq.s32.totalorder %v398, %v427
          %vm440 = vcmp.eq.s32.totalorder %v401, %v427
          %vm441 = vcmp.eq.s32.totalorder %v404, %v427
          %vm442 = vcmp.eq.s32.totalorder %v407, %v427
          %vm443 = vcmp.eq.s32.totalorder %v410, %v427
          %v444 = vlaneseq
          %v445 = vshrl.u32 %v444, 7
          %v446 = vadd.s32 %v445, 8
          %v447 = vadd.s32 %v445, 16
          %v448 = vadd.s32 %v445, 24
          %v449 = vadd.s32 %v445, 32
          %v450 = vadd.s32 %v445, 40
          %v451 = vadd.s32 %v445, 48
          %v452 = vadd.s32 %v445, 56
          %v453 = vadd.s32 %v445, 64
          %v454 = vadd.s32 %v445, 72
          %v455 = vadd.s32 %v445, 80
          %v456 = vadd.s32 %v445, 88
          %v457 = vadd.s32 %v445, 96
          %v458 = vadd.s32 %v445, 104
          %v459 = vadd.s32 %v445, 112
          %v460 = vadd.s32 %v445, 120
          %vm461 = vcmp.lt.s32.totalorder %v362, %v445
          %vm462 = vcmp.lt.s32.totalorder %v362, %v446
          %vm463 = vcmp.lt.s32.totalorder %v362, %v447
          %vm464 = vcmp.lt.s32.totalorder %v362, %v448
          %vm465 = vcmp.lt.s32.totalorder %v362, %v449
          %vm466 = vcmp.lt.s32.totalorder %v362, %v450
          %vm467 = vcmp.lt.s32.totalorder %v362, %v451
          %vm468 = vcmp.lt.s32.totalorder %v362, %v452
          %vm469 = vcmp.lt.s32.totalorder %v362, %v453
          %vm470 = vcmp.lt.s32.totalorder %v362, %v454
          %vm471 = vcmp.lt.s32.totalorder %v362, %v455
          %vm472 = vcmp.lt.s32.totalorder %v362, %v456
          %vm473 = vcmp.lt.s32.totalorder %v362, %v457
          %vm474 = vcmp.lt.s32.totalorder %v362, %v458
          %vm475 = vcmp.lt.s32.totalorder %v362, %v459
          %vm476 = vcmp.lt.s32.totalorder %v362, %v460
          %vm477 = vmand %vm428, %vm461
          %vm478 = vmand %vm429, %vm462
          %vm479 = vmand %vm430, %vm463
          %vm480 = vmand %vm431, %vm464
          %vm481 = vmand %vm432, %vm465
          %vm482 = vmand %vm433, %vm466
          %vm483 = vmand %vm434, %vm467
          %vm484 = vmand %vm435, %vm468
          %vm485 = vmand %vm436, %vm469
          %vm486 = vmand %vm437, %vm470
          %vm487 = vmand %vm438, %vm471
          %vm488 = vmand %vm439, %vm472
          %vm489 = vmand %vm440, %vm473
          %vm490 = vmand %vm441, %vm474
          %vm491 = vmand %vm442, %vm475
          %vm492 = vmand %vm443, %vm476
          %v493 = vsel %vm477, 1.0, 0.0
          %v494 = vsel %vm478, 1.0, 0.0
          %v495 = vsel %vm479, 1.0, 0.0
          %v496 = vsel %vm480, 1.0, 0.0
          %v497 = vsel %vm481, 1.0, 0.0
          %v498 = vsel %vm482, 1.0, 0.0
          %v499 = vsel %vm483, 1.0, 0.0
          %v500 = vsel %vm484, 1.0, 0.0
          %v501 = vsel %vm485, 1.0, 0.0
          %v502 = vsel %vm486, 1.0, 0.0
          %v503 = vsel %vm487, 1.0, 0.0
          %v504 = vsel %vm488, 1.0, 0.0
          %v505 = vsel %vm489, 1.0, 0.0
          %v506 = vsel %vm490, 1.0, 0.0
          %v507 = vsel %vm491, 1.0, 0.0
          %v508 = vsel %vm492, 1.0, 0.0
          %509 = vadd.xlane.f32.xlu0 %v493
          %v510 = vpop.xlane.xlu0 %509
          %511 = vadd.xlane.f32.xlu0 %v494
          %v512 = vpop.xlane.xlu0 %511
          %513 = vadd.xlane.f32.xlu0 %v495
          %v514 = vpop.xlane.xlu0 %513
          %515 = vadd.xlane.f32.xlu0 %v496
          %v516 = vpop.xlane.xlu0 %515
          %517 = vadd.xlane.f32.xlu0 %v497
          %v518 = vpop.xlane.xlu0 %517
          %519 = vadd.xlane.f32.xlu0 %v498
          %v520 = vpop.xlane.xlu0 %519
          %521 = vadd.xlane.f32.xlu0 %v499
          %v522 = vpop.xlane.xlu0 %521
          %523 = vadd.xlane.f32.xlu0 %v500
          %v524 = vpop.xlane.xlu0 %523
          %525 = vadd.xlane.f32.xlu0 %v501
          %v526 = vpop.xlane.xlu0 %525
          %527 = vadd.xlane.f32.xlu0 %v502
          %v528 = vpop.xlane.xlu0 %527
          %529 = vadd.xlane.f32.xlu0 %v503
          %v530 = vpop.xlane.xlu0 %529
          %531 = vadd.xlane.f32.xlu0 %v504
          %v532 = vpop.xlane.xlu0 %531
          %533 = vadd.xlane.f32.xlu0 %v505
          %v534 = vpop.xlane.xlu0 %533
          %535 = vadd.xlane.f32.xlu0 %v506
          %v536 = vpop.xlane.xlu0 %535
          %537 = vadd.xlane.f32.xlu0 %v507
          %v538 = vpop.xlane.xlu0 %537
          %539 = vadd.xlane.f32.xlu0 %v508
          %v540 = vpop.xlane.xlu0 %539
          %v541 = vld [vmem:[#allocation4] sm:$0x1]
          %v542 = vld [vmem:[%s4 + $0x1] sm:$0x1]
          %v544 = vperm.slane %v541, 0
          %v546 = vsel %vm411, %v544, 0.0
          %v547 = vsel %vm412, %v544, 0.0
          %v548 = vsel %vm413, %v544, 0.0
          %v549 = vsel %vm414, %v544, 0.0
          %v550 = vsel %vm415, %v544, 0.0
          %v551 = vsel %vm416, %v544, 0.0
          %v552 = vsel %vm417, %v544, 0.0
          %v553 = vsel %vm418, %v544, 0.0
          %v554 = vsel %vm419, %v544, 0.0
          %v555 = vsel %vm420, %v544, 0.0
          %v556 = vsel %vm421, %v544, 0.0
          %v557 = vsel %vm422, %v544, 0.0
          %v558 = vsel %vm423, %v544, 0.0
          %v559 = vsel %vm424, %v544, 0.0
          %v560 = vsel %vm425, %v544, 0.0
          %v561 = vsel %vm426, %v544, 0.0
          %562 = vadd.xlane.f32.xlu0 %v546
          %v563 = vpop.xlane.xlu0 %562
          %564 = vadd.xlane.f32.xlu0 %v547
          %v565 = vpop.xlane.xlu0 %564
          %566 = vadd.xlane.f32.xlu0 %v548
          %v567 = vpop.xlane.xlu0 %566
          %568 = vadd.xlane.f32.xlu0 %v549
          %v569 = vpop.xlane.xlu0 %568
          %570 = vadd.xlane.f32.xlu0 %v550
          %v571 = vpop.xlane.xlu0 %570
          %572 = vadd.xlane.f32.xlu0 %v551
          %v573 = vpop.xlane.xlu0 %572
          %574 = vadd.xlane.f32.xlu0 %v552
          %v575 = vpop.xlane.xlu0 %574
          %576 = vadd.xlane.f32.xlu0 %v553
          %v577 = vpop.xlane.xlu0 %576
          %578 = vadd.xlane.f32.xlu0 %v554
          %v579 = vpop.xlane.xlu0 %578
          %580 = vadd.xlane.f32.xlu0 %v555
          %v581 = vpop.xlane.xlu0 %580
          %582 = vadd.xlane.f32.xlu0 %v556
          %v583 = vpop.xlane.xlu0 %582
          %584 = vadd.xlane.f32.xlu0 %v557
          %v585 = vpop.xlane.xlu0 %584
          %586 = vadd.xlane.f32.xlu0 %v558
          %v587 = vpop.xlane.xlu0 %586
          %588 = vadd.xlane.f32.xlu0 %v559
          %v589 = vpop.xlane.xlu0 %588
          %590 = vadd.xlane.f32.xlu0 %v560
          %v591 = vpop.xlane.xlu0 %590
          %592 = vadd.xlane.f32.xlu0 %v561
          %v593 = vpop.xlane.xlu0 %592
          %v594 = vperm.slane %v542, 0
          %v595 = vsel %vm411, %v594, 0.0
          %v596 = vsel %vm412, %v594, 0.0
          %v597 = vsel %vm413, %v594, 0.0
          %v598 = vsel %vm414, %v594, 0.0
          %v599 = vsel %vm415, %v594, 0.0
          %v600 = vsel %vm416, %v594, 0.0
          %v601 = vsel %vm417, %v594, 0.0
          %v602 = vsel %vm418, %v594, 0.0
          %v603 = vsel %vm419, %v594, 0.0
          %v604 = vsel %vm420, %v594, 0.0
          %v605 = vsel %vm421, %v594, 0.0
          %v606 = vsel %vm422, %v594, 0.0
          %v607 = vsel %vm423, %v594, 0.0
          %v608 = vsel %vm424, %v594, 0.0
          %v609 = vsel %vm425, %v594, 0.0
          %v610 = vsel %vm426, %v594, 0.0
          %611 = vadd.xlane.f32.xlu0 %v595
          %v612 = vpop.xlane.xlu0 %611
          %613 = vadd.xlane.f32.xlu0 %v596
          %v614 = vpop.xlane.xlu0 %613
          %615 = vadd.xlane.f32.xlu0 %v597
          %v616 = vpop.xlane.xlu0 %615
          %617 = vadd.xlane.f32.xlu0 %v598
          %v618 = vpop.xlane.xlu0 %617
          %619 = vadd.xlane.f32.xlu0 %v599
          %v620 = vpop.xlane.xlu0 %619
          %621 = vadd.xlane.f32.xlu0 %v600
          %v622 = vpop.xlane.xlu0 %621
          %623 = vadd.xlane.f32.xlu0 %v601
          %v624 = vpop.xlane.xlu0 %623
          %625 = vadd.xlane.f32.xlu0 %v602
          %v626 = vpop.xlane.xlu0 %625
          %627 = vadd.xlane.f32.xlu0 %v603
          %v628 = vpop.xlane.xlu0 %627
          %629 = vadd.xlane.f32.xlu0 %v604
          %v630 = vpop.xlane.xlu0 %629
          %631 = vadd.xlane.f32.xlu0 %v605
          %v632 = vpop.xlane.xlu0 %631
          %633 = vadd.xlane.f32.xlu0 %v606
          %v634 = vpop.xlane.xlu0 %633
          %635 = vadd.xlane.f32.xlu0 %v607
          %v636 = vpop.xlane.xlu0 %635
          %637 = vadd.xlane.f32.xlu0 %v608
          %v638 = vpop.xlane.xlu0 %637
          %639 = vadd.xlane.f32.xlu0 %v609
          %v640 = vpop.xlane.xlu0 %639
          %641 = vadd.xlane.f32.xlu0 %v610
          %v642 = vpop.xlane.xlu0 %641
          %v643 = vadd.f32 %v563, %v510
          %v644 = vadd.f32 %v565, %v512
          %v645 = vadd.f32 %v567, %v514
          %v646 = vadd.f32 %v569, %v516
          %v647 = vadd.f32 %v571, %v518
          %v648 = vadd.f32 %v573, %v520
          %v649 = vadd.f32 %v575, %v522
          %v650 = vadd.f32 %v577, %v524
          %v651 = vadd.f32 %v579, %v526
          %v652 = vadd.f32 %v581, %v528
          %v653 = vadd.f32 %v583, %v530
          %v654 = vadd.f32 %v585, %v532
          %v655 = vadd.f32 %v587, %v534
          %v656 = vadd.f32 %v589, %v536
          %v657 = vadd.f32 %v591, %v538
          %v658 = vadd.f32 %v593, %v540
          %vm659 = vcmp.lt.f32.partialorder %v643, 0.5
          %vm660 = vcmp.lt.f32.partialorder %v644, 0.5
          %vm661 = vcmp.lt.f32.partialorder %v645, 0.5
          %vm662 = vcmp.lt.f32.partialorder %v646, 0.5
          %vm663 = vcmp.lt.f32.partialorder %v647, 0.5
          %vm664 = vcmp.lt.f32.partialorder %v648, 0.5
          %vm665 = vcmp.lt.f32.partialorder %v649, 0.5
          %vm666 = vcmp.lt.f32.partialorder %v650, 0.5
          %vm667 = vcmp.lt.f32.partialorder %v651, 0.5
          %vm668 = vcmp.lt.f32.partialorder %v652, 0.5
          %vm669 = vcmp.lt.f32.partialorder %v653, 0.5
          %vm670 = vcmp.lt.f32.partialorder %v654, 0.5
          %vm671 = vcmp.lt.f32.partialorder %v655, 0.5
          %vm672 = vcmp.lt.f32.partialorder %v656, 0.5
          %vm673 = vcmp.lt.f32.partialorder %v657, 0.5
          %vm674 = vcmp.lt.f32.partialorder %v658, 0.5
          %vm675 = vcmp.lt.f32.partialorder %v612, 0.5
          %vm676 = vcmp.lt.f32.partialorder %v614, 0.5
          %vm677 = vcmp.lt.f32.partialorder %v616, 0.5
          %vm678 = vcmp.lt.f32.partialorder %v618, 0.5
          %vm679 = vcmp.lt.f32.partialorder %v620, 0.5
          %vm680 = vcmp.lt.f32.partialorder %v622, 0.5
          %vm681 = vcmp.lt.f32.partialorder %v624, 0.5
          %vm682 = vcmp.lt.f32.partialorder %v626, 0.5
          %vm683 = vcmp.lt.f32.partialorder %v628, 0.5
          %vm684 = vcmp.lt.f32.partialorder %v630, 0.5
          %vm685 = vcmp.lt.f32.partialorder %v632, 0.5
          %vm686 = vcmp.lt.f32.partialorder %v634, 0.5
          %vm687 = vcmp.lt.f32.partialorder %v636, 0.5
          %vm688 = vcmp.lt.f32.partialorder %v638, 0.5
          %vm689 = vcmp.lt.f32.partialorder %v640, 0.5
          %vm690 = vcmp.lt.f32.partialorder %v642, 0.5
          %vm691 = vmand %vm659, %vm675
          %vm692 = vmand %vm660, %vm676
          %vm693 = vmand %vm661, %vm677
          %vm694 = vmand %vm662, %vm678
          %vm695 = vmand %vm663, %vm679
          %vm696 = vmand %vm664, %vm680
          %vm697 = vmand %vm665, %vm681
          %vm698 = vmand %vm666, %vm682
          %vm699 = vmand %vm667, %vm683
          %vm700 = vmand %vm668, %vm684
          %vm701 = vmand %vm669, %vm685
          %vm702 = vmand %vm670, %vm686
          %vm703 = vmand %vm671, %vm687
          %vm704 = vmand %vm672, %vm688
          %vm705 = vmand %vm673, %vm689
          %vm706 = vmand %vm674, %vm690
          %v707 = vsel %vm691, 0.0, -2.3025851
          %v708 = vsel %vm692, 0.0, -2.3025851
          %v709 = vsel %vm693, 0.0, -2.3025851
          %v710 = vsel %vm694, 0.0, -2.3025851
          %v711 = vsel %vm695, 0.0, -2.3025851
          %v712 = vsel %vm696, 0.0, -2.3025851
          %v713 = vsel %vm697, 0.0, -2.3025851
          %v714 = vsel %vm698, 0.0, -2.3025851
          %v715 = vsel %vm699, 0.0, -2.3025851
          %v716 = vsel %vm700, 0.0, -2.3025851
          %v717 = vsel %vm701, 0.0, -2.3025851
          %v718 = vsel %vm702, 0.0, -2.3025851
          %v719 = vsel %vm703, 0.0, -2.3025851
          %v720 = vsel %vm704, 0.0, -2.3025851
          %v721 = vsel %vm705, 0.0, -2.3025851
          %v722 = vsel %vm706, 0.0, -2.3025851
          %v723 = vsub.f32 -1.0, %v643
          %v724 = vsub.f32 -1.0, %v644
          %v725 = vsub.f32 -1.0, %v645
          %v726 = vsub.f32 -1.0, %v646
          %v727 = vsub.f32 -1.0, %v647
          %v728 = vsub.f32 -1.0, %v648
          %v729 = vsub.f32 -1.0, %v649
          %v730 = vsub.f32 -1.0, %v650
          %v731 = vsub.f32 -1.0, %v651
          %v732 = vsub.f32 -1.0, %v652
          %v733 = vsub.f32 -1.0, %v653
          %v734 = vsub.f32 -1.0, %v654
          %v735 = vsub.f32 -1.0, %v655
          %v736 = vsub.f32 -1.0, %v656
          %v737 = vsub.f32 -1.0, %v657
          %v738 = vsub.f32 -1.0, %v658
          %v739 = vmul.f32 %v723, -0.105360515
          %v740 = vmul.f32 %v724, -0.105360515
          %v741 = vmul.f32 %v725, -0.105360515
          %v742 = vmul.f32 %v726, -0.105360515
          %v743 = vmul.f32 %v727, -0.105360515
          %v744 = vmul.f32 %v728, -0.105360515
          %v745 = vmul.f32 %v729, -0.105360515
          %v746 = vmul.f32 %v730, -0.105360515
          %v747 = vmul.f32 %v731, -0.105360515
          %v748 = vmul.f32 %v732, -0.105360515
          %v749 = vmul.f32 %v733, -0.105360515
          %v750 = vmul.f32 %v734, -0.105360515
          %v751 = vmul.f32 %v735, -0.105360515
          %v752 = vmul.f32 %v736, -0.105360515
          %v753 = vmul.f32 %v737, -0.105360515
          %v754 = vmul.f32 %v738, -0.105360515
          %v755 = vadd.f32 %v328, %v739
          %v756 = vadd.f32 %v329, %v740
          %v757 = vadd.f32 %v330, %v741
          %v758 = vadd.f32 %v331, %v742
          %v759 = vadd.f32 %v332, %v743
          %v760 = vadd.f32 %v333, %v744
          %v761 = vadd.f32 %v334, %v745
          %v762 = vadd.f32 %v335, %v746
          %v763 = vadd.f32 %v336, %v747
          %v764 = vadd.f32 %v337, %v748
          %v765 = vadd.f32 %v338, %v749
          %v766 = vadd.f32 %v339, %v750
          %v767 = vadd.f32 %v340, %v751
          %v768 = vadd.f32 %v341, %v752
          %v769 = vadd.f32 %v342, %v753
          %v770 = vadd.f32 %v343, %v754
          %v771 = vadd.f32 %v755, %v707
          %v772 = vadd.f32 %v756, %v708
          %v773 = vadd.f32 %v757, %v709
          %v774 = vadd.f32 %v758, %v710
          %v775 = vadd.f32 %v759, %v711
          %v776 = vadd.f32 %v760, %v712
          %v777 = vadd.f32 %v761, %v713
          %v778 = vadd.f32 %v762, %v714
          %v779 = vadd.f32 %v763, %v715
          %v780 = vadd.f32 %v764, %v716
          %v781 = vadd.f32 %v765, %v717
          %v782 = vadd.f32 %v766, %v718
          %v783 = vadd.f32 %v767, %v719
          %v784 = vadd.f32 %v768, %v720
          %v785 = vadd.f32 %v769, %v721
          %v786 = vadd.f32 %v770, %v722
          %v787 = vld [vmem:[#allocation2] sm:$0x1]
          %789 = vset.pattern.permute.xlu0 0
          %790 = vperm.xlu0 %789, %v771
          %v791 = vpop.permute.xlu0 %790
          %794 = vset.pattern.permute.xlu0 0
          %795 = vperm.xlu0 %794, %v772
          %v796 = vpop.permute.xlu0 %795
          %799 = vset.pattern.permute.xlu0 0
          %800 = vperm.xlu0 %799, %v773
          %v801 = vpop.permute.xlu0 %800
          %804 = vset.pattern.permute.xlu0 0
          %805 = vperm.xlu0 %804, %v774
          %v806 = vpop.permute.xlu0 %805
          %809 = vset.pattern.permute.xlu0 0
          %810 = vperm.xlu0 %809, %v775
          %v811 = vpop.permute.xlu0 %810
          %814 = vset.pattern.permute.xlu0 0
          %815 = vperm.xlu0 %814, %v776
          %v816 = vpop.permute.xlu0 %815
          %819 = vset.pattern.permute.xlu0 0
          %820 = vperm.xlu0 %819, %v777
          %v821 = vpop.permute.xlu0 %820
          %824 = vset.pattern.permute.xlu0 0
          %825 = vperm.xlu0 %824, %v778
          %v826 = vpop.permute.xlu0 %825
          %829 = vset.pattern.permute.xlu0 0
          %830 = vperm.xlu0 %829, %v779
          %v831 = vpop.permute.xlu0 %830
          %834 = vset.pattern.permute.xlu0 0
          %835 = vperm.xlu0 %834, %v780
          %v836 = vpop.permute.xlu0 %835
          %839 = vset.pattern.permute.xlu0 0
          %840 = vperm.xlu0 %839, %v781
          %v841 = vpop.permute.xlu0 %840
          %844 = vset.pattern.permute.xlu0 0
          %845 = vperm.xlu0 %844, %v782
          %v846 = vpop.permute.xlu0 %845
          %849 = vset.pattern.permute.xlu0 0
          %850 = vperm.xlu0 %849, %v783
          %v851 = vpop.permute.xlu0 %850
          %854 = vset.pattern.permute.xlu0 0
          %855 = vperm.xlu0 %854, %v784
          %v856 = vpop.permute.xlu0 %855
          %859 = vset.pattern.permute.xlu0 0
          %860 = vperm.xlu0 %859, %v785
          %v861 = vpop.permute.xlu0 %860
          %864 = vset.pattern.permute.xlu0 0
          %865 = vperm.xlu0 %864, %v786
          %v866 = vpop.permute.xlu0 %865
          %v868 = vsel %vm411, %v791, -1e+30
          %v869 = vsel %vm412, %v796, -1e+30
          %v870 = vsel %vm413, %v801, -1e+30
          %v871 = vsel %vm414, %v806, -1e+30
          %v872 = vsel %vm415, %v811, -1e+30
          %v873 = vsel %vm416, %v816, -1e+30
          %v874 = vsel %vm417, %v821, -1e+30
          %v875 = vsel %vm418, %v826, -1e+30
          %v876 = vsel %vm419, %v831, -1e+30
          %v877 = vsel %vm420, %v836, -1e+30
          %v878 = vsel %vm421, %v841, -1e+30
          %v879 = vsel %vm422, %v846, -1e+30
          %v880 = vsel %vm423, %v851, -1e+30
          %v881 = vsel %vm424, %v856, -1e+30
          %v882 = vsel %vm425, %v861, -1e+30
          %v883 = vsel %vm426, %v866, -1e+30
          %v884 = vmax.f32 %v868, %v872
          %v885 = vmax.f32 %v869, %v873
          %v886 = vmax.f32 %v870, %v874
          %v887 = vmax.f32 %v871, %v875
          %v888 = vmax.f32 %v884, %v876
          %v889 = vmax.f32 %v885, %v877
          %v890 = vmax.f32 %v886, %v878
          %v891 = vmax.f32 %v887, %v879
          %v892 = vmax.f32 %v888, %v880
          %v893 = vmax.f32 %v889, %v881
          %v894 = vmax.f32 %v890, %v882
          %v895 = vmax.f32 %v891, %v883
          %v896 = vmax.f32 %v892, %v893
          %v897 = vmax.f32 %v894, %v895
          %v898 = vmax.f32 %v896, %v897
          %v899 = vrot.slane %v898, 4
          %v900 = vmax.f32 %v898, %v899
          %v901 = vrot.slane %v900, 2
          %v902 = vmax.f32 %v900, %v901
          %v903 = vrot.slane %v902, 1
          %v904 = vmax.f32 %v902, %v903
          %v905 = vmax.f32 %v787, %v904
          %v907 = vperm.slane %v905, 0
          %v909 = vsub.f32 %v791, %v907
          %v910 = vsub.f32 %v796, %v907
          %v911 = vsub.f32 %v801, %v907
          %v912 = vsub.f32 %v806, %v907
          %v913 = vsub.f32 %v811, %v907
          %v914 = vsub.f32 %v816, %v907
          %v915 = vsub.f32 %v821, %v907
          %v916 = vsub.f32 %v826, %v907
          %v917 = vsub.f32 %v831, %v907
          %v918 = vsub.f32 %v836, %v907
          %v919 = vsub.f32 %v841, %v907
          %v920 = vsub.f32 %v846, %v907
          %v921 = vsub.f32 %v851, %v907
          %v922 = vsub.f32 %v856, %v907
          %v923 = vsub.f32 %v861, %v907
          %v924 = vsub.f32 %v866, %v907
          %v925 = vsel %vm411, %v909, -1e+30
          %v926 = vsel %vm412, %v910, -1e+30
          %v927 = vsel %vm413, %v911, -1e+30
          %v928 = vsel %vm414, %v912, -1e+30
          %v929 = vsel %vm415, %v913, -1e+30
          %v930 = vsel %vm416, %v914, -1e+30
          %v931 = vsel %vm417, %v915, -1e+30
          %v932 = vsel %vm418, %v916, -1e+30
          %v933 = vsel %vm419, %v917, -1e+30
          %v934 = vsel %vm420, %v918, -1e+30
          %v935 = vsel %vm421, %v919, -1e+30
          %v936 = vsel %vm422, %v920, -1e+30
          %v937 = vsel %vm423, %v921, -1e+30
          %v938 = vsel %vm424, %v922, -1e+30
          %v939 = vsel %vm425, %v923, -1e+30
          %v940 = vsel %vm426, %v924, -1e+30
          %v941 = vmul.f32 %v925, 1.442695
          %v942 = vpow.pop %v941
          %v943 = vmul.f32 %v926, 1.442695
          %v944 = vpow.pop %v943
          %v945 = vmul.f32 %v927, 1.442695
          %v946 = vpow.pop %v945
          %v947 = vmul.f32 %v928, 1.442695
          %v948 = vpow.pop %v947
          %v949 = vmul.f32 %v929, 1.442695
          %v950 = vpow.pop %v949
          %v951 = vmul.f32 %v930, 1.442695
          %v952 = vpow.pop %v951
          %v953 = vmul.f32 %v931, 1.442695
          %v954 = vpow.pop %v953
          %v955 = vmul.f32 %v932, 1.442695
          %v956 = vpow.pop %v955
          %v957 = vmul.f32 %v933, 1.442695
          %v958 = vpow.pop %v957
          %v959 = vmul.f32 %v934, 1.442695
          %v960 = vpow.pop %v959
          %v961 = vmul.f32 %v935, 1.442695
          %v962 = vpow.pop %v961
          %v963 = vmul.f32 %v936, 1.442695
          %v964 = vpow.pop %v963
          %v965 = vmul.f32 %v937, 1.442695
          %v966 = vpow.pop %v965
          %v967 = vmul.f32 %v938, 1.442695
          %v968 = vpow.pop %v967
          %v969 = vmul.f32 %v939, 1.442695
          %v970 = vpow.pop %v969
          %v971 = vmul.f32 %v940, 1.442695
          %v972 = vpow.pop %v971
          %v973 = vld [vmem:[#allocation3] sm:$0x1]
          %v974 = vsub.f32 %v787, %v905
          %v975 = vmul.f32 %v974, 1.442695
          %v976 = vpow.pop %v975
          %v977 = vmul.f32 %v973, %v976
          %v978 = vadd.f32 %v942, %v944
          %v979 = vadd.f32 %v978, %v946
          %v980 = vadd.f32 %v979, %v948
          %v981 = vadd.f32 %v980, %v950
          %v982 = vadd.f32 %v981, %v952
          %v983 = vadd.f32 %v982, %v954
          %v984 = vadd.f32 %v983, %v956
          %v985 = vadd.f32 %v984, %v958
          %v986 = vadd.f32 %v985, %v960
          %v987 = vadd.f32 %v986, %v962
          %v988 = vadd.f32 %v987, %v964
          %v989 = vadd.f32 %v988, %v966
          %v990 = vadd.f32 %v989, %v968
          %v991 = vadd.f32 %v990, %v970
          %v992 = vadd.f32 %v991, %v972
          %v993 = vrot.slane %v992, 4
          %v994 = vadd.f32 %v992, %v993
          %v995 = vrot.slane %v994, 2
          %v996 = vadd.f32 %v994, %v995
          %v997 = vrot.slane %v996, 1
          %v998 = vadd.f32 %v996, %v997
          %v999 = vadd.f32 %v977, %v998
          %1000 = vst [vmem:[#allocation3] sm:$0x1] %v999
          %1001 = vst [vmem:[#allocation2] sm:$0x1] %v905
          %v1002 = vsel %vm411, 1.0, 0.0
          %v1003 = vsel %vm412, 1.0, 0.0
          %v1004 = vsel %vm413, 1.0, 0.0
          %v1005 = vsel %vm414, 1.0, 0.0
          %v1006 = vsel %vm415, 1.0, 0.0
          %v1007 = vsel %vm416, 1.0, 0.0
          %v1008 = vsel %vm417, 1.0, 0.0
          %v1009 = vsel %vm418, 1.0, 0.0
          %v1010 = vsel %vm419, 1.0, 0.0
          %v1011 = vsel %vm420, 1.0, 0.0
          %v1012 = vsel %vm421, 1.0, 0.0
          %v1013 = vsel %vm422, 1.0, 0.0
          %v1014 = vsel %vm423, 1.0, 0.0
          %v1015 = vsel %vm424, 1.0, 0.0
          %v1016 = vsel %vm425, 1.0, 0.0
          %v1017 = vsel %vm426, 1.0, 0.0
          %v1018 = vadd.f32 %v1002, %v1003
          %v1019 = vadd.f32 %v1018, %v1004
          %v1020 = vadd.f32 %v1019, %v1005
          %v1021 = vadd.f32 %v1020, %v1006
          %v1022 = vadd.f32 %v1021, %v1007
          %v1023 = vadd.f32 %v1022, %v1008
          %v1024 = vadd.f32 %v1023, %v1009
          %v1025 = vadd.f32 %v1024, %v1010
          %v1026 = vadd.f32 %v1025, %v1011
          %v1027 = vadd.f32 %v1026, %v1012
          %v1028 = vadd.f32 %v1027, %v1013
          %v1029 = vadd.f32 %v1028, %v1014
          %v1030 = vadd.f32 %v1029, %v1015
          %v1031 = vadd.f32 %v1030, %v1016
          %v1032 = vadd.f32 %v1031, %v1017
          %v1033 = vrot.slane %v1032, 4
          %v1034 = vadd.f32 %v1032, %v1033
          %v1035 = vrot.slane %v1034, 2
          %v1036 = vadd.f32 %v1034, %v1035
          %v1037 = vrot.slane %v1036, 1
          %v1038 = vadd.f32 %v1036, %v1037
          %v1039 = vadd.f32 %v541, %v1038
          %1040 = vst [vmem:[#allocation4] sm:$0x1] %v1039
          %1041 = vst [vmem:[%s290] sm:$0x1] 0.0
          %p1042 = scmp.eq.s32.totalorder %s26, 1
          // Predicated region
          $region49: #{video_softmax.1} parent=47 // pred_check
            %p1043 = pneg %p1042
          $region50: #{video_softmax.1} parent=47 // pred_check_branch
            %1045 = sbr.rel (%p1043) target = $region52
          $region51: #{video_softmax.1} parent=47 // pred_region
            %v1046 = vld [vmem:[%s4] sm:$0x1]
            %v1047 = vld [vmem:[%s4 + $0x1] sm:$0x1]
            %v1048 = vld [vmem:[#allocation4] sm:$0x1]
            %vm1049 = vcmp.gt.f32.partialorder %v1048, 0.5
            %v1050 = vmul.f32 %v1048, -0.105360515
            %v1051 = vld [vmem:[#allocation2] sm:$0x1]
            %v1052 = vadd.f32 %v1050, %v1051
            %v1053 = vld [vmem:[#allocation3] sm:$0x1]
            %v1054 = vlog2.pop %v1053
            %v1055 = vmul.f32 %v1054, 0.6931472
            %v1056 = vadd.f32 %v1052, %v1055
            %v1057 = vsel %vm1049, %v1056, %v1046
            %v1058 = vsel %vm1049, 1.0, 0.0
            %v1059 = vmax.f32 %v1047, %v1058
            %1060 = vst [vmem:[%s6] sm:$0x1] %v1057
            %1061 = vst [vmem:[%s6 + $0x1] sm:$0x1] %v1059
            %vm1062 = vcmp.eq.s32.totalorder %v445, %v362
            %vm1063 = vcmp.eq.s32.totalorder %v446, %v362
            %vm1064 = vcmp.eq.s32.totalorder %v447, %v362
            %vm1065 = vcmp.eq.s32.totalorder %v448, %v362
            %vm1066 = vcmp.eq.s32.totalorder %v449, %v362
            %vm1067 = vcmp.eq.s32.totalorder %v450, %v362
            %vm1068 = vcmp.eq.s32.totalorder %v451, %v362
            %vm1069 = vcmp.eq.s32.totalorder %v452, %v362
            %vm1070 = vcmp.eq.s32.totalorder %v453, %v362
            %vm1071 = vcmp.eq.s32.totalorder %v454, %v362
            %vm1072 = vcmp.eq.s32.totalorder %v455, %v362
            %vm1073 = vcmp.eq.s32.totalorder %v456, %v362
            %vm1074 = vcmp.eq.s32.totalorder %v457, %v362
            %vm1075 = vcmp.eq.s32.totalorder %v458, %v362
            %vm1076 = vcmp.eq.s32.totalorder %v459, %v362
            %vm1077 = vcmp.eq.s32.totalorder %v460, %v362
            %v1079 = vperm.slane %v1057, 0
            %v1081 = vsel %vm1062, %v1079, 0.0
            %v1082 = vsel %vm1063, %v1079, 0.0
            %v1083 = vsel %vm1064, %v1079, 0.0
            %v1084 = vsel %vm1065, %v1079, 0.0
            %v1085 = vsel %vm1066, %v1079, 0.0
            %v1086 = vsel %vm1067, %v1079, 0.0
            %v1087 = vsel %vm1068, %v1079, 0.0
            %v1088 = vsel %vm1069, %v1079, 0.0
            %v1089 = vsel %vm1070, %v1079, 0.0
            %v1090 = vsel %vm1071, %v1079, 0.0
            %v1091 = vsel %vm1072, %v1079, 0.0
            %v1092 = vsel %vm1073, %v1079, 0.0
            %v1093 = vsel %vm1074, %v1079, 0.0
            %v1094 = vsel %vm1075, %v1079, 0.0
            %v1095 = vsel %vm1076, %v1079, 0.0
            %v1096 = vsel %vm1077, %v1079, 0.0
            %1097 = vadd.xlane.f32.xlu0 %v1081
            %v1098 = vpop.xlane.xlu0 %1097
            %1099 = vadd.xlane.f32.xlu0 %v1082
            %v1100 = vpop.xlane.xlu0 %1099
            %1101 = vadd.xlane.f32.xlu0 %v1083
            %v1102 = vpop.xlane.xlu0 %1101
            %1103 = vadd.xlane.f32.xlu0 %v1084
            %v1104 = vpop.xlane.xlu0 %1103
            %1105 = vadd.xlane.f32.xlu0 %v1085
            %v1106 = vpop.xlane.xlu0 %1105
            %1107 = vadd.xlane.f32.xlu0 %v1086
            %v1108 = vpop.xlane.xlu0 %1107
            %1109 = vadd.xlane.f32.xlu0 %v1087
            %v1110 = vpop.xlane.xlu0 %1109
            %1111 = vadd.xlane.f32.xlu0 %v1088
            %v1112 = vpop.xlane.xlu0 %1111
            %1113 = vadd.xlane.f32.xlu0 %v1089
            %v1114 = vpop.xlane.xlu0 %1113
            %1115 = vadd.xlane.f32.xlu0 %v1090
            %v1116 = vpop.xlane.xlu0 %1115
            %1117 = vadd.xlane.f32.xlu0 %v1091
            %v1118 = vpop.xlane.xlu0 %1117
            %1119 = vadd.xlane.f32.xlu0 %v1092
            %v1120 = vpop.xlane.xlu0 %1119
            %1121 = vadd.xlane.f32.xlu0 %v1093
            %v1122 = vpop.xlane.xlu0 %1121
            %1123 = vadd.xlane.f32.xlu0 %v1094
            %v1124 = vpop.xlane.xlu0 %1123
            %1125 = vadd.xlane.f32.xlu0 %v1095
            %v1126 = vpop.xlane.xlu0 %1125
            %1127 = vadd.xlane.f32.xlu0 %v1096
            %v1128 = vpop.xlane.xlu0 %1127
            %vm1129 = vcmask 7168
            %1130 = vst.msk [vmem:[#allocation5] sm:$0xff] %vm1129, %v1098
            %1131 = vst.msk [vmem:[#allocation5 + $0x8] sm:$0xff] %vm1129, %v1100
            %1132 = vst.msk [vmem:[#allocation5 + $0x10] sm:$0xff] %vm1129, %v1102
            %1133 = vst.msk [vmem:[#allocation5 + $0x18] sm:$0xff] %vm1129, %v1104
            %1134 = vst.msk [vmem:[#allocation5 + $0x20] sm:$0xff] %vm1129, %v1106
            %1135 = vst.msk [vmem:[#allocation5 + $0x28] sm:$0xff] %vm1129, %v1108
            %1136 = vst.msk [vmem:[#allocation5 + $0x30] sm:$0xff] %vm1129, %v1110
            %1137 = vst.msk [vmem:[#allocation5 + $0x38] sm:$0xff] %vm1129, %v1112
            %1138 = vst.msk [vmem:[#allocation5 + $0x40] sm:$0xff] %vm1129, %v1114
            %1139 = vst.msk [vmem:[#allocation5 + $0x48] sm:$0xff] %vm1129, %v1116
            %1140 = vst.msk [vmem:[#allocation5 + $0x50] sm:$0xff] %vm1129, %v1118
            %1141 = vst.msk [vmem:[#allocation5 + $0x58] sm:$0xff] %vm1129, %v1120
            %1142 = vst.msk [vmem:[#allocation5 + $0x60] sm:$0xff] %vm1129, %v1122
            %1143 = vst.msk [vmem:[#allocation5 + $0x68] sm:$0xff] %vm1129, %v1124
            %1144 = vst.msk [vmem:[#allocation5 + $0x70] sm:$0xff] %vm1129, %v1126
            %1145 = vst.msk [vmem:[#allocation5 + $0x78] sm:$0xff] %vm1129, %v1128
          $region52: #{video_softmax.1} parent=47 // pred_fallthru
            _
        $region48: #{video_softmax.1} parent=39 // pred_fallthru
          _
        %p1146 = scmp.eq.s32.totalorder %s25, 1
        // Predicated region
        $region53: #{video_softmax.1} parent=39 // pred_check
          %p1147 = pneg %p1146
        $region54: #{video_softmax.1} parent=39 // pred_check_branch
          %1149 = sbr.rel (%p1147) target = $region56
        $region55: #{video_softmax.1} parent=39 // pred_region
          %v1150 = vld [vmem:[%s295] sm:$0x1]
          %v1151 = vld [vmem:[%s298] sm:$0x1]
          %v1152 = vlaneseq
          %v1153 = vshrl.u32 %v1152, 7
          %v1154 = vadd.s32 %v1153, 8
          %v1155 = vadd.s32 %v1153, 16
          %v1156 = vadd.s32 %v1153, 24
          %v1157 = vadd.s32 %v1153, 32
          %v1158 = vadd.s32 %v1153, 40
          %v1159 = vadd.s32 %v1153, 48
          %v1160 = vadd.s32 %v1153, 56
          %v1161 = vadd.s32 %v1153, 64
          %v1162 = vadd.s32 %v1153, 72
          %v1163 = vadd.s32 %v1153, 80
          %v1164 = vadd.s32 %v1153, 88
          %v1165 = vadd.s32 %v1153, 96
          %v1166 = vadd.s32 %v1153, 104
          %v1167 = vadd.s32 %v1153, 112
          %v1168 = vadd.s32 %v1153, 120
          %v1169 = vperm.slane %v1151, 0
          %vm1170 = vcmp.eq.s32.totalorder %v1153, %v1169
          %vm1171 = vcmp.eq.s32.totalorder %v1154, %v1169
          %vm1172 = vcmp.eq.s32.totalorder %v1155, %v1169
          %vm1173 = vcmp.eq.s32.totalorder %v1156, %v1169
          %vm1174 = vcmp.eq.s32.totalorder %v1157, %v1169
          %vm1175 = vcmp.eq.s32.totalorder %v1158, %v1169
          %vm1176 = vcmp.eq.s32.totalorder %v1159, %v1169
          %vm1177 = vcmp.eq.s32.totalorder %v1160, %v1169
          %vm1178 = vcmp.eq.s32.totalorder %v1161, %v1169
          %vm1179 = vcmp.eq.s32.totalorder %v1162, %v1169
          %vm1180 = vcmp.eq.s32.totalorder %v1163, %v1169
          %vm1181 = vcmp.eq.s32.totalorder %v1164, %v1169
          %vm1182 = vcmp.eq.s32.totalorder %v1165, %v1169
          %vm1183 = vcmp.eq.s32.totalorder %v1166, %v1169
          %vm1184 = vcmp.eq.s32.totalorder %v1167, %v1169
          %vm1185 = vcmp.eq.s32.totalorder %v1168, %v1169
          %v1186 = vld [vmem:[#allocation5] sm:$0xff]
          %v1187 = vld [vmem:[#allocation5 + $0x8] sm:$0xff]
          %v1188 = vld [vmem:[#allocation5 + $0x10] sm:$0xff]
          %v1189 = vld [vmem:[#allocation5 + $0x18] sm:$0xff]
          %v1190 = vld [vmem:[#allocation5 + $0x20] sm:$0xff]
          %v1191 = vld [vmem:[#allocation5 + $0x28] sm:$0xff]
          %v1192 = vld [vmem:[#allocation5 + $0x30] sm:$0xff]
          %v1193 = vld [vmem:[#allocation5 + $0x38] sm:$0xff]
          %v1194 = vld [vmem:[#allocation5 + $0x40] sm:$0xff]
          %v1195 = vld [vmem:[#allocation5 + $0x48] sm:$0xff]
          %v1196 = vld [vmem:[#allocation5 + $0x50] sm:$0xff]
          %v1197 = vld [vmem:[#allocation5 + $0x58] sm:$0xff]
          %v1198 = vld [vmem:[#allocation5 + $0x60] sm:$0xff]
          %v1199 = vld [vmem:[#allocation5 + $0x68] sm:$0xff]
          %v1200 = vld [vmem:[#allocation5 + $0x70] sm:$0xff]
          %v1201 = vld [vmem:[#allocation5 + $0x78] sm:$0xff]
          %1203 = vset.pattern.permute.xlu0 0
          %1204 = vperm.xlu0 %1203, %v1186
          %v1205 = vpop.permute.xlu0 %1204
          %1208 = vset.pattern.permute.xlu0 0
          %1209 = vperm.xlu0 %1208, %v1187
          %v1210 = vpop.permute.xlu0 %1209
          %1213 = vset.pattern.permute.xlu0 0
          %1214 = vperm.xlu0 %1213, %v1188
          %v1215 = vpop.permute.xlu0 %1214
          %1218 = vset.pattern.permute.xlu0 0
          %1219 = vperm.xlu0 %1218, %v1189
          %v1220 = vpop.permute.xlu0 %1219
          %1223 = vset.pattern.permute.xlu0 0
          %1224 = vperm.xlu0 %1223, %v1190
          %v1225 = vpop.permute.xlu0 %1224
          %1228 = vset.pattern.permute.xlu0 0
          %1229 = vperm.xlu0 %1228, %v1191
          %v1230 = vpop.permute.xlu0 %1229
          %1233 = vset.pattern.permute.xlu0 0
          %1234 = vperm.xlu0 %1233, %v1192
          %v1235 = vpop.permute.xlu0 %1234
          %1238 = vset.pattern.permute.xlu0 0
          %1239 = vperm.xlu0 %1238, %v1193
          %v1240 = vpop.permute.xlu0 %1239
          %1243 = vset.pattern.permute.xlu0 0
          %1244 = vperm.xlu0 %1243, %v1194
          %v1245 = vpop.permute.xlu0 %1244
          %1248 = vset.pattern.permute.xlu0 0
          %1249 = vperm.xlu0 %1248, %v1195
          %v1250 = vpop.permute.xlu0 %1249
          %1253 = vset.pattern.permute.xlu0 0
          %1254 = vperm.xlu0 %1253, %v1196
          %v1255 = vpop.permute.xlu0 %1254
          %1258 = vset.pattern.permute.xlu0 0
          %1259 = vperm.xlu0 %1258, %v1197
          %v1260 = vpop.permute.xlu0 %1259
          %1263 = vset.pattern.permute.xlu0 0
          %1264 = vperm.xlu0 %1263, %v1198
          %v1265 = vpop.permute.xlu0 %1264
          %1268 = vset.pattern.permute.xlu0 0
          %1269 = vperm.xlu0 %1268, %v1199
          %v1270 = vpop.permute.xlu0 %1269
          %1273 = vset.pattern.permute.xlu0 0
          %1274 = vperm.xlu0 %1273, %v1200
          %v1275 = vpop.permute.xlu0 %1274
          %1278 = vset.pattern.permute.xlu0 0
          %1279 = vperm.xlu0 %1278, %v1201
          %v1280 = vpop.permute.xlu0 %1279
          %v1282 = vsel %vm1170, %v1205, 0.0
          %v1283 = vsel %vm1171, %v1210, 0.0
          %v1284 = vsel %vm1172, %v1215, 0.0
          %v1285 = vsel %vm1173, %v1220, 0.0
          %v1286 = vsel %vm1174, %v1225, 0.0
          %v1287 = vsel %vm1175, %v1230, 0.0
          %v1288 = vsel %vm1176, %v1235, 0.0
          %v1289 = vsel %vm1177, %v1240, 0.0
          %v1290 = vsel %vm1178, %v1245, 0.0
          %v1291 = vsel %vm1179, %v1250, 0.0
          %v1292 = vsel %vm1180, %v1255, 0.0
          %v1293 = vsel %vm1181, %v1260, 0.0
          %v1294 = vsel %vm1182, %v1265, 0.0
          %v1295 = vsel %vm1183, %v1270, 0.0
          %v1296 = vsel %vm1184, %v1275, 0.0
          %v1297 = vsel %vm1185, %v1280, 0.0
          %v1298 = vadd.f32 %v1282, %v1283
          %v1299 = vadd.f32 %v1298, %v1284
          %v1300 = vadd.f32 %v1299, %v1285
          %v1301 = vadd.f32 %v1300, %v1286
          %v1302 = vadd.f32 %v1301, %v1287
          %v1303 = vadd.f32 %v1302, %v1288
          %v1304 = vadd.f32 %v1303, %v1289
          %v1305 = vadd.f32 %v1304, %v1290
          %v1306 = vadd.f32 %v1305, %v1291
          %v1307 = vadd.f32 %v1306, %v1292
          %v1308 = vadd.f32 %v1307, %v1293
          %v1309 = vadd.f32 %v1308, %v1294
          %v1310 = vadd.f32 %v1309, %v1295
          %v1311 = vadd.f32 %v1310, %v1296
          %v1312 = vadd.f32 %v1311, %v1297
          %v1313 = vrot.slane %v1312, 4
          %v1314 = vadd.f32 %v1312, %v1313
          %v1315 = vrot.slane %v1314, 2
          %v1316 = vadd.f32 %v1314, %v1315
          %v1317 = vrot.slane %v1316, 1
          %v1318 = vadd.f32 %v1316, %v1317
          %v1319 = vsub.f32 %v1150, %v1318
          %v1320 = vmul.f32 %v1319, 1.442695
          %v1321 = vpow.pop %v1320
          %1322 = vst [vmem:[%s290] sm:$0x1] %v1321
        $region56: #{video_softmax.1} parent=39 // pred_fallthru
          _
        %s1323 = sand.u32 %s166, 1
        %s1324 = scalar_lea.sflag [#allocation7], %s1323
        %s1325 = sand.u32 %s166, 1
        %s1326 = scalar_lea.vmem [#allocation6], %s1325
        // Predicated region
        $region57: #{video_softmax.1} parent=39 // pred_check
          %p1327 = pneg %p176
        $region58: #{video_softmax.1} parent=39 // pred_check_branch
          %1329 = sbr.rel (%p1327) target = $region60
        $region59: #{video_softmax.1} parent=39 // pred_region
          %1331 = vsyncadd %s1324, 0
          %s1332 = scalar_lea.hbm %s5, %s26
          %s1334 = sshll.u32 %s1326, 4
          %s1335 = int_to_ptr.vmem [resolvable:$true] %s1334
          %s1336 = sshll.u32 %s1332, 4
          %s1337 = int_to_ptr.hbm [resolvable:$true] %s1336
          %1339 = dma.vmem_to_hbm [thread:$0]  %s1335, 16, %s1337, %s1324
        $region60: #{video_softmax.1} parent=39 // pred_fallthru
          _
        // Predicated region
        $region61: #{video_softmax.1} parent=39 // pred_check
          %p1340 = pneg %p197
        $region62: #{video_softmax.1} parent=39 // pred_check_branch
          %1342 = sbr.rel (%p1340) target = $region64
        $region63: #{video_softmax.1} parent=39 // pred_region
          _
        $region64: #{video_softmax.1} parent=39 // pred_fallthru
          _
        // Predicated region
        $region65: #{video_softmax.1} parent=39 // pred_check
          %p1343 = pneg %p197
        $region66: #{video_softmax.1} parent=39 // pred_check_branch
          %1345 = sbr.rel (%p1343) target = $region68
        $region67: #{video_softmax.1} parent=39 // pred_region
          _
        $region68: #{video_softmax.1} parent=39 // pred_fallthru
          _
      $region40: #{video_softmax.1} parent=5 // pred_fallthru
        _
      %p1346 = scmp.le.s32.totalorder 2, %s16
      // Predicated region
      $region69: #{video_softmax.1} parent=5 // pred_check
        %p1347 = pneg %p1346
      $region70: #{video_softmax.1} parent=5 // pred_check_branch
        %1349 = sbr.rel (%p1347) target = $region72
      $region71: #{video_softmax.1} parent=5 // pred_region
        %s1350 = ssub.s32 %s16, 2
        // Predicated region
        $region73: #{video_softmax.1} parent=71 // pred_check
          %p1351 = pneg %p182
        $region74: #{video_softmax.1} parent=71 // pred_check_branch
          %1353 = sbr.rel (%p1351) target = $region76
        $region75: #{video_softmax.1} parent=71 // pred_region
          %s1354 = sand.u32 %s167, 1
          %s1355 = scalar_lea.sflag [#allocation7], %s1354
          %s1356 = sand.u32 %s167, 1
          %s1357 = scalar_lea.vmem [#allocation6], %s1356
          %1359 = dma.done %s1355, 16
        $region76: #{video_softmax.1} parent=71 // pred_fallthru
          _
      $region72: #{video_softmax.1} parent=5 // pred_fallthru
        _
    $region6: #{video_softmax.1} parent=1 // loop_footer
      %s20 = sadd.s32 1, %s16
    $region7: #{video_softmax.1} parent=1 // loop_footer_branch
      %15 = sbr.rel target = $region3
    $region8: #{video_softmax.1} parent=1 // loop_exit
      _
    %1360 = vsyncpa [#allocation7], 1
    %s1361 = scalar_lea.sflag [#allocation7], 1
    %1362 = vsyncpa %s1361, 1

</llo_original>
